<compile_context>
chip_gen: v6e
topology: v6e:2x2x1
jax: 0.10.0
libtpu: 0.0.40
codegen_flags: <defaults>
</compile_context>

<pallas_src>
import functools

import numpy as np
import jax
import jax.numpy as jnp
from jax.experimental import pallas as pl
from jax.experimental.pallas import tpu as pltpu

EPS = 1e-5


# --------------------------- small static helpers ---------------------------
def _pick_block(dim, cap, align):
    """Largest divisor of `dim` that is <= cap and a multiple of `align`
    (or the full dim itself)."""
    for d in range(min(cap, dim), 0, -1):
        if dim % d == 0 and (d % align == 0 or d == dim):
            return d
    return dim


def _pick_chunk_rows(H, Wp, Cout):
    """Rows-per-chunk for the in-kernel 9-tap accumulation.  On the wide-image
    / low-channel layers keep the f32 accumulator ~<=128KB so it can live in
    vregs (avoids hammering the single store slot on v5e); on the high-channel
    layers the conv is compute-bound and bigger chunks are fine."""
    if Cout <= 128:
        cap = 256
    else:
        cap = 65536 // Cout
    cap = max(cap, Wp)
    r = 1
    for cand in range(1, H + 1):
        if H % cand == 0 and cand * Wp <= cap:
            r = cand
    return r


# ----------------- fused tiled matmul (MXU) with epilogue --------------------
def _mm_kernel_factory(nk, has_prelu, has_res):
    def kernel(*refs):
        a_ref, b_ref, s_ref, t_ref = refs[0], refs[1], refs[2], refs[3]
        idx = 4
        alpha_ref = None
        res_ref = None
        if has_prelu:
            alpha_ref = refs[idx]
            idx += 1
        if has_res:
            res_ref = refs[idx]
            idx += 1
        o_ref, acc_ref = refs[idx], refs[idx + 1]

        k = pl.program_id(2)

        @pl.when(k == 0)
        def _():
            acc_ref[...] = jnp.zeros_like(acc_ref)

        acc_ref[...] += jnp.dot(a_ref[...], b_ref[...],
                                preferred_element_type=jnp.float32)

        @pl.when(k == nk - 1)
        def _():
            y = acc_ref[...] * s_ref[...] + t_ref[...]
            if has_prelu:
                y = jnp.where(y >= 0, y, alpha_ref[...] * y)
            if has_res:
                y = y + res_ref[...].astype(jnp.float32)   # residual add in f32
            o_ref[...] = y.astype(o_ref.dtype)

    return kernel


@functools.lru_cache(maxsize=None)
def _build_matmul(M, K, N, has_prelu, has_res, out_dtype, tm_cap, tn_cap, tk_cap):
    tm = _pick_block(M, tm_cap, 16)     # sublane dim of bf16 operands
    tn = _pick_block(N, tn_cap, 128)    # lane dim
    tk = _pick_block(K, tk_cap, 128)    # lane dim of A / sublane dim of B
    nk = K // tk

    kernel = _mm_kernel_factory(nk, has_prelu, has_res)
    in_specs = [pl.BlockSpec((tm, tk), lambda i, j, k: (i, k)),
                pl.BlockSpec((tk, tn), lambda i, j, k: (k, j)),
                pl.BlockSpec((1, tn), lambda i, j, k: (0, j)),
                pl.BlockSpec((1, tn), lambda i, j, k: (0, j))]
    if has_prelu:
        in_specs.append(pl.BlockSpec((1, tn), lambda i, j, k: (0, j)))
    if has_res:
        in_specs.append(pl.BlockSpec((tm, tn), lambda i, j, k: (i, j)))

    fn = pl.pallas_call(
        kernel,
        out_shape=jax.ShapeDtypeStruct((M, N), out_dtype),
        grid_spec=pltpu.PrefetchScalarGridSpec(
            num_scalar_prefetch=0,
            grid=(M // tm, N // tn, nk),
            in_specs=in_specs,
            out_specs=pl.BlockSpec((tm, tn), lambda i, j, k: (i, j)),
            scratch_shapes=[pltpu.VMEM((tm, tn), jnp.float32)]),
        compiler_params=pltpu.CompilerParams(
            dimension_semantics=("parallel", "parallel", "arbitrary")),
    )
    return jax.jit(fn)


def fused_matmul(a, b, scale, shift, alpha=None, residual=None,
                 out_dtype=jnp.bfloat16, tm_cap=256, tn_cap=256, tk_cap=2048):
    """out = epilogue(a @ b); a:[M,K], b:[K,N] bf16; scale/shift/alpha:[1,N] f32;
    residual:[M,N].  Epilogue: y = acc*scale + shift [; prelu(alpha)] [; + residual]."""
    M, K = a.shape
    N = b.shape[1]
    fn = _build_matmul(M, K, N, alpha is not None, residual is not None,
                       out_dtype, tm_cap, tn_cap, tk_cap)
    args = [a.astype(jnp.bfloat16), b, scale, shift]
    if alpha is not None:
        args.append(alpha)
    if residual is not None:
        args.append(residual.astype(jnp.bfloat16))
    return fn(*args)


# ------------- direct 3x3 stride-1 conv on the padded canvas layout ----------
# Canvas: [(H+3)*(W+2), C+1] rows, valid pixel (r,c) at flat index
# (r+1)*(W+2) + (c+1); channel C is a 0/1 validity indicator; halo is all-zero.
# The 9 taps are in-VMEM row-shifted slices feeding the MXU; the bn1 shift of
# the following conv is pre-folded into the weights against the indicator
# channel, and the indicator column of the accumulator doubles as the output
# junk/halo mask so the kernel can emit a clean canvas directly.
def _dconv_kernel_factory(Wp, M, Cout, chunk, has_prelu, has_res):
    n_chunks = M // chunk
    taps = [kh * Wp + kw for kh in range(3) for kw in range(3)]

    def kernel(*refs):
        x_ref, w_ref, s_ref, t_ref = refs[0], refs[1], refs[2], refs[3]
        idx = 4
        alpha_ref = None
        res_ref = None
        if has_prelu:
            alpha_ref = refs[idx]
            idx += 1
        if has_res:
            res_ref = refs[idx]
            idx += 1
        o_ref = refs[idx]
        odt = o_ref.dtype

        # Zero the head/tail halo rows of the output canvas (the interleaved
        # per-row halo entries are covered by the indicator-masked stores).
        o_ref[pl.ds(0, Wp + 1), :] = jnp.zeros((Wp + 1, Cout + 1), odt)
        o_ref[pl.ds(Wp + 1 + M, 2 * Wp - 1), :] = jnp.zeros((2 * Wp - 1, Cout + 1), odt)

        def do_chunk(base):
            acc = None
            for tap, d in enumerate(taps):
                a = x_ref[pl.ds(base + d, chunk), :]            # shifted view
                p = jnp.dot(a, w_ref[tap], preferred_element_type=jnp.float32)
                acc = p if acc is None else acc + p
            ind = acc[:, Cout:Cout + 1]                         # 0/1 validity
            y = acc[:, :Cout] * s_ref[...] + t_ref[...]
            if has_prelu:
                y = jnp.where(y >= 0, y, alpha_ref[...] * y)
            if has_res:
                r = res_ref[pl.ds(Wp + 1 + base, chunk), :]
                y = y + r[:, :Cout].astype(jnp.float32)         # residual in f32
            y = y * ind                                         # zero junk/halo
            out_c = jnp.concatenate([y, ind], axis=-1).astype(odt)
            o_ref[pl.ds(Wp + 1 + base, chunk), :] = out_c

        if n_chunks <= 8:
            for c in range(n_chunks):
                do_chunk(c * chunk)
        else:
            @pl.loop(0, n_chunks)
            def _chunk_loop(c):
                do_chunk(c * chunk)

    return kernel


@functools.lru_cache(maxsize=None)
def _build_direct_conv(N, H, W, Cin, Cout, has_prelu, has_res):
    Wp = W + 2
    M = H * Wp
    R = (H + 3) * Wp
    chunk = _pick_chunk_rows(H, Wp, Cout) * Wp
    kernel = _dconv_kernel_factory(Wp, M, Cout, chunk, has_prelu, has_res)

    in_specs = [pl.BlockSpec((None, R, Cin + 1), lambda n: (n, 0, 0)),
                pl.BlockSpec((9, Cin + 1, Cout + 1), lambda n: (0, 0, 0)),
                pl.BlockSpec((1, Cout), lambda n: (0, 0)),
                pl.BlockSpec((1, Cout), lambda n: (0, 0))]
    if has_prelu:
        in_specs.append(pl.BlockSpec((1, Cout), lambda n: (0, 0)))
    if has_res:
        in_specs.append(pl.BlockSpec((None, R, Cout + 1), lambda n: (n, 0, 0)))

    fn = pl.pallas_call(
        kernel,
        out_shape=jax.ShapeDtypeStruct((N, R, Cout + 1), jnp.bfloat16),
        grid_spec=pltpu.PrefetchScalarGridSpec(
            num_scalar_prefetch=0,
            grid=(N,),
            in_specs=in_specs,
            out_specs=pl.BlockSpec((None, R, Cout + 1), lambda n: (n, 0, 0))),
        compiler_params=pltpu.CompilerParams(
            dimension_semantics=("parallel",),
            vmem_limit_bytes=40 * 1024 * 1024),
    )
    return jax.jit(fn)


def conv3x3_direct(xc, H, W, w_ext, scale, shift, alpha=None, res_canvas=None):
    """3x3 / stride 1 / pad 1 conv, canvas in -> canvas out, with fused
    (pre-folded) bn1, BN [+PReLU] [+residual] epilogue."""
    N = xc.shape[0]
    Cin = xc.shape[2] - 1
    Cout = w_ext.shape[2] - 1
    assert xc.shape[1] == (H + 3) * (W + 2)
    fn = _build_direct_conv(N, H, W, Cin, Cout, alpha is not None,
                            res_canvas is not None)
    args = [xc, w_ext, scale, shift]
    if alpha is not None:
        args.append(alpha)
    if res_canvas is not None:
        args.append(res_canvas)
    return fn(*args)


# ------------------- canvas construction (wrapper-side) ----------------------
def to_canvas(x_nhwc):
    """[N,H,W,C] valid activation -> canvas [N,(H+3)*(W+2),C+1] bf16 with a
    validity-indicator channel and an all-zero halo."""
    N, H, W, C = x_nhwc.shape
    x = x_nhwc.astype(jnp.bfloat16)
    x = jnp.concatenate([x, jnp.ones((N, H, W, 1), jnp.bfloat16)], axis=-1)
    x = jnp.pad(x, ((0, 0), (1, 2), (1, 1), (0, 0)))
    return x.reshape(N, (H + 3) * (W + 2), C + 1)


# -------------------- im2col path (stem conv + stride-2 convs) ---------------
def conv3x3_s2_from_canvas(hc, H, W, C, wm, scale, shift, residual):
    """3x3 / stride 2 / pad 1 conv reading a canvas (zero halo == zero pad)."""
    N = hc.shape[0]
    Ho, Wo = H // 2, W // 2
    h4 = hc.reshape(N, H + 3, W + 2, C + 1)
    xpad = h4[:, :H + 2, :W + 2, :C]                  # exact zero-padded input
    cols = []
    for kh in range(3):
        for kw in range(3):
            cols.append(xpad[:, kh:kh + 2 * Ho - 1:2, kw:kw + 2 * Wo - 1:2, :])
    patches = jnp.concatenate(cols, axis=-1).reshape(N * Ho * Wo, 9 * C)
    out = fused_matmul(patches, wm, scale, shift, residual=residual)
    return out.reshape(N, Ho, Wo, wm.shape[1])


def conv1x1_ds_from_canvas(xc, H, W, Cin, wm, scale, shift):
    """1x1 stride-2 downsample conv + BN, reading the block-input canvas."""
    N = xc.shape[0]
    x4 = xc.reshape(N, H + 3, W + 2, Cin + 1)
    xs = x4[:, 1:H + 1:2, 1:W + 1:2, :Cin]
    Ho, Wo = xs.shape[1], xs.shape[2]
    return fused_matmul(xs.reshape(N * Ho * Wo, Cin), wm, scale, shift)


def stem_conv(x_nhwc, wm, scale, shift, alpha):
    """Stem 3x3 stride-1 conv (Cin=3) + bn1 + prelu via im2col."""
    N, H, W, _ = x_nhwc.shape
    xp = jnp.pad(x_nhwc.astype(jnp.bfloat16), ((0, 0), (1, 1), (1, 1), (0, 0)))
    cols = [xp[:, kh:kh + H, kw:kw + W, :] for kh in range(3) for kw in range(3)]
    patches = jnp.concatenate(cols, axis=-1).reshape(N * H * W, 27)
    h = fused_matmul(patches, wm, scale, shift, alpha=alpha)
    return h.reshape(N, H, W, wm.shape[1])


# ------------------------------- model structure ------------------------------
def ibasic_block(xc, H, W, p):
    """One IBasicBlock.  Canvas in -> canvas out (plus new H, W)."""
    planes = p["w1"].shape[2] - 1
    cin = xc.shape[2] - 1
    # conv1 (bn1 pre-folded) + bn2 + prelu
    hc = conv3x3_direct(xc, H, W, p["w1"], p["s2"], p["t2"], alpha=p["alpha"])
    if "wd" not in p:                                   # stride-1 block
        oc = conv3x3_direct(hc, H, W, p["w2"], p["s3"], p["t3"], res_canvas=xc)
        return oc, H, W
    # stride-2 block: fused 1x1 downsample gives the identity; conv2 runs
    # through the im2col matmul with bn3 + residual epilogue.
    ident = conv1x1_ds_from_canvas(xc, H, W, cin, p["wd"], p["sd"], p["td"])
    out = conv3x3_s2_from_canvas(hc, H, W, planes, p["w2m"], p["s3"], p["t3"],
                                 residual=ident)
    return to_canvas(out), H // 2, W // 2


def extended_iresnet50_forward(x_nchw, pp):
    x = jnp.transpose(x_nchw.astype(jnp.float32), (0, 2, 3, 1))        # NCHW -> NHWC
    N, H, W, _ = x.shape
    h = stem_conv(x, pp["stem_wm"], pp["stem_s"], pp["stem_t"], pp["stem_alpha"])
    xc = to_canvas(h)
    for blocks in pp["layers"]:                                        # layer1..layer4
        for blk in blocks:
            xc, H, W = ibasic_block(xc, H, W, blk)
    C = xc.shape[2] - 1
    hv = xc.reshape(N, H + 3, W + 2, C + 1)[:, 1:1 + H, 1:1 + W, :C]   # [N,7,7,512]
    # torch.flatten(x, 1) in NCHW order; backbone bn2 / fc / dropout(p=0) /
    # features-BN / cosine Linear are all linear and folded into head_v/head_c.
    flat = jnp.transpose(hv, (0, 3, 1, 2)).reshape(N, -1).astype(jnp.bfloat16)
    out = fused_matmul(flat, pp["head_v"], pp["head_ones"], pp["head_c"],
                       out_dtype=jnp.float32, tm_cap=8, tn_cap=128, tk_cap=2048)
    return out                                                          # [N, 1] f32


# -------------------- one-time parameter pre-transformation -------------------
def _bn_affine(bn):
    s = bn["gamma"] / jnp.sqrt(bn["var"] + EPS)
    t = bn["beta"] - bn["mean"] * s
    return s.astype(jnp.float32), t.astype(jnp.float32)


def _w_ext(w, s1=None, t1=None):
    """[Cout,Cin,3,3] torch conv weight -> [9, Cin+1, Cout+1] bf16 canvas weight.
    The extra input row carries the bn1 shift (t1 @ w) against the indicator
    channel; the extra output column passes the indicator through (center tap)."""
    cout, cin = int(w.shape[0]), int(w.shape[1])
    w9 = jnp.transpose(w, (2, 3, 1, 0)).reshape(9, cin, cout).astype(jnp.float32)
    if s1 is not None:
        w9s = w9 * s1.reshape(1, cin, 1)
        tb = jnp.einsum("c,kcd->kd", t1, w9)
    else:
        w9s = w9
        tb = jnp.zeros((9, cout), jnp.float32)
    wx = jnp.zeros((9, cin + 1, cout + 1), jnp.float32)
    wx = wx.at[:, :cin, :cout].set(w9s)
    wx = wx.at[:, cin, :cout].set(tb)
    wx = wx.at[4, cin, cout].set(1.0)            # center tap -> indicator pass-through
    return wx.astype(jnp.bfloat16)


def _wm(w):    # [Cout,Cin,3,3] -> [9*Cin, Cout] bf16 ((kh,kw,ci) row order)
    return jnp.transpose(w, (2, 3, 1, 0)).reshape(9 * w.shape[1], w.shape[0]).astype(jnp.bfloat16)


def _w1x1(w):  # [Cout,Cin,1,1] -> [Cin, Cout] bf16
    return jnp.transpose(w, (2, 3, 1, 0)).reshape(w.shape[1], w.shape[0]).astype(jnp.bfloat16)


def prepare_params(params):
    pp = {}
    s, t = _bn_affine(params["bn1"])
    pp["stem_wm"] = _wm(params["conv1"])
    pp["stem_s"] = s.reshape(1, -1)
    pp["stem_t"] = t.reshape(1, -1)
    pp["stem_alpha"] = params["prelu"].reshape(1, -1).astype(jnp.float32)

    layers = []
    for blocks in params["layers"]:
        blks = []
        for b in blocks:
            q = {}
            s1, t1 = _bn_affine(b["bn1"])
            q["w1"] = _w_ext(b["conv1"], s1, t1)          # bn1 folded into conv1
            s2, t2 = _bn_affine(b["bn2"])
            q["s2"], q["t2"] = s2.reshape(1, -1), t2.reshape(1, -1)
            q["alpha"] = b["prelu"].reshape(1, -1).astype(jnp.float32)
            s3, t3 = _bn_affine(b["bn3"])
            q["s3"], q["t3"] = s3.reshape(1, -1), t3.reshape(1, -1)
            if b["stride"] == 1:
                q["w2"] = _w_ext(b["conv2"])              # indicator pass-through only
            else:
                q["w2m"] = _wm(b["conv2"])
                q["wd"] = _w1x1(b["ds_conv"])
                sd, td = _bn_affine(b["ds_bn"])
                q["sd"], q["td"] = sd.reshape(1, -1), td.reshape(1, -1)
            blks.append(q)
        layers.append(blks)
    pp["layers"] = layers

    # Head: fold backbone bn2 into the fc columns (exact; NCHW channel-major
    # flatten), then fold fc bias + features BatchNorm1d + cosine Linear into a
    # single matvec:  out = flat @ head_v + head_c.
    s2d, t2d = _bn_affine(params["bn2"])
    c = s2d.shape[0]
    hw = params["fc_w"].shape[1] // c
    col_scale = jnp.repeat(s2d, hw)
    col_shift = jnp.repeat(t2d, hw)
    fc_w = params["fc_w"].astype(jnp.float32)
    fc_b = params["fc_b"] + fc_w @ col_shift
    fc_w = fc_w * col_scale[None, :]
    fbn = params["features"]
    sf = fbn["gamma"] / jnp.sqrt(fbn["var"] + EPS)
    fc_t = fbn["beta"] + (fc_b - fbn["mean"]) * sf             # [512]
    cw = params["cosine_w"].astype(jnp.float32)[0]             # [512]
    head_v = fc_w.T @ (sf * cw)                                # [25088]
    head_c = jnp.sum(fc_t * cw)
    pp["head_v"] = head_v.reshape(-1, 1).astype(jnp.bfloat16)
    pp["head_c"] = head_c.reshape(1, 1).astype(jnp.float32)
    pp["head_ones"] = jnp.ones((1, 1), jnp.float32)
    return pp


# ---------------------- deterministic synthetic parameters ----------------------
class _ParamGen:
    def __init__(self, seed):
        self._key = jax.random.PRNGKey(seed)

    def next(self):
        self._key, sub = jax.random.split(self._key)
        return sub


def _make_bn(g, c):
    return dict(
        gamma=1.0 + 0.1 * jax.random.normal(g.next(), (c,), jnp.float32),
        beta=0.1 * jax.random.normal(g.next(), (c,), jnp.float32),
        mean=0.1 * jax.random.normal(g.next(), (c,), jnp.float32),
        var=0.9 + 0.2 * jax.random.uniform(g.next(), (c,), jnp.float32),
    )


def _make_conv(g, cout, cin, k):
    fan_in = cin * k * k
    return jax.random.normal(g.next(), (cout, cin, k, k), jnp.float32) / np.sqrt(fan_in)


def _make_block(g, inplanes, planes, stride):
    p = dict(
        bn1=_make_bn(g, inplanes),
        conv1=_make_conv(g, planes, inplanes, 3),
        bn2=_make_bn(g, planes),
        prelu=0.25 + 0.02 * jax.random.normal(g.next(), (planes,), jnp.float32),
        conv2=_make_conv(g, planes, planes, 3),
        bn3=_make_bn(g, planes),
        stride=stride,
    )
    if stride != 1 or inplanes != planes:
        p["ds_conv"] = _make_conv(g, planes, inplanes, 1)
        p["ds_bn"] = _make_bn(g, planes)
    return p


def make_params(seed=42):
    g = _ParamGen(seed)
    params = dict(
        conv1=_make_conv(g, 64, 3, 3),
        bn1=_make_bn(g, 64),
        prelu=0.25 + 0.02 * jax.random.normal(g.next(), (64,), jnp.float32),
    )
    cfg = [(64, 3), (128, 4), (256, 14), (512, 3)]  # iresnet50 block counts
    inplanes, layers = 64, []
    for planes, nblocks in cfg:
        blocks = []
        for b in range(nblocks):
            blocks.append(_make_block(g, inplanes, planes, 2 if b == 0 else 1))
            inplanes = planes
        layers.append(blocks)
    params["layers"] = layers
    params["bn2"] = _make_bn(g, 512)
    fc_in = 512 * 7 * 7
    params["fc_w"] = jax.random.normal(g.next(), (512, fc_in), jnp.float32) / np.sqrt(fc_in)
    params["fc_b"] = 0.1 * jax.random.normal(g.next(), (512,), jnp.float32)
    params["features"] = _make_bn(g, 512)
    params["cosine_w"] = jax.random.normal(g.next(), (1, 512), jnp.float32) / np.sqrt(512)
    return params


if __name__ == "__main__":
    params = make_params(seed=42)
    pp = prepare_params(params)          # one-time weight pre-transform (BN folds, bf16)
    # iresnet50's fc fixes fc_scale = 7*7, which implies 112x112 inputs.
    x = jax.random.normal(jax.random.PRNGKey(0), (2, 3, 112, 112), jnp.float32)
    fwd = jax.jit(extended_iresnet50_forward)
    y = fwd(x, pp)
    y = jax.block_until_ready(y)
    assert y.shape == (2, 1) and y.dtype == jnp.float32
    print("KERNEL_OK")
</pallas_src>

<mosaic_0001>
module attributes {stable_mosaic.version = 11 : i64} {
  func.func @kernel(%arg0: i32, %arg1: i32, %arg2: i32, %arg3: memref<256x27xbf16, #tpu.memory_space<vmem>>, %arg4: memref<27x64xbf16, #tpu.memory_space<vmem>>, %arg5: memref<1x64xf32, #tpu.memory_space<vmem>>, %arg6: memref<1x64xf32, #tpu.memory_space<vmem>>, %arg7: memref<1x64xf32, #tpu.memory_space<vmem>>, %arg8: memref<256x64xbf16, #tpu.memory_space<vmem>>, %arg9: memref<256x64xf32, #tpu.memory_space<vmem>>) attributes {dimension_semantics = [#tpu.dimension_semantics<parallel>, #tpu.dimension_semantics<parallel>, #tpu.dimension_semantics<arbitrary>], iteration_bounds = array<i64: 98, 1, 1>, scalar_prefetch = 0 : i64, scratch_operands = 1 : i64, tpu.core_type = #tpu.core_type<tc>, window_params = [{transform_indices = @transform_0, window_bounds = array<i64: 256, 27>}, {transform_indices = @transform_1, window_bounds = array<i64: 27, 64>}, {transform_indices = @transform_2, window_bounds = array<i64: 1, 64>}, {transform_indices = @transform_3, window_bounds = array<i64: 1, 64>}, {transform_indices = @transform_4, window_bounds = array<i64: 1, 64>}, {transform_indices = @transform_5, window_bounds = array<i64: 256, 64>}]} {
    %c0_i32 = arith.constant 0 : i32
    %0 = arith.cmpi eq, %arg2, %c0_i32 : i32
    %1 = arith.extui %0 : i1 to i32
    %c0_i32_0 = arith.constant 0 : i32
    %2 = arith.cmpi ne, %1, %c0_i32_0 : i32
    scf.if %2 {
      %cst_10 = arith.constant 0.000000e+00 : f32
      %12 = vector.broadcast %cst_10 : f32 to vector<256x64xf32>
      %c0_11 = arith.constant 0 : index
      %c0_12 = arith.constant 0 : index
      %13 = vector.load %arg9[%c0_11, %c0_12] : memref<256x64xf32, #tpu.memory_space<vmem>>, vector<256x64xf32>
      tpu.vector_store %arg9[%c0_11, %c0_12], %12 {strides = array<i32>} : memref<256x64xf32, #tpu.memory_space<vmem>>, vector<256x64xf32>,
    } else {
    }
    %c0 = arith.constant 0 : index
    %c0_1 = arith.constant 0 : index
    %3 = vector.load %arg9[%c0, %c0_1] : memref<256x64xf32, #tpu.memory_space<vmem>>, vector<256x64xf32>
    %c0_2 = arith.constant 0 : index
    %c0_3 = arith.constant 0 : index
    %4 = vector.load %arg3[%c0_2, %c0_3] : memref<256x27xbf16, #tpu.memory_space<vmem>>, vector<256x27xbf16>
    %c0_4 = arith.constant 0 : index
    %c0_5 = arith.constant 0 : index
    %5 = vector.load %arg4[%c0_4, %c0_5] : memref<27x64xbf16, #tpu.memory_space<vmem>>, vector<27x64xbf16>
    %cst = arith.constant dense<0.000000e+00> : vector<256x64xf32>
    %6 = tpu.matmul %4, %5, %cst {dimension_numbers = #tpu.dot_dimension_numbers<[1], [0], [0], [1], [0, 0, 1, 1], [], []>} : vector<256x27xbf16>, vector<27x64xbf16>, vector<256x64xf32> -> vector<256x64xf32>
    %7 = arith.addf %3, %6 : vector<256x64xf32>
    %c0_6 = arith.constant 0 : index
    %c0_7 = arith.constant 0 : index
    %8 = vector.load %arg9[%c0_6, %c0_7] : memref<256x64xf32, #tpu.memory_space<vmem>>, vector<256x64xf32>
    tpu.vector_store %arg9[%c0_6, %c0_7], %7 {strides = array<i32>} : memref<256x64xf32, #tpu.memory_space<vmem>>, vector<256x64xf32>,
    %c0_i32_8 = arith.constant 0 : i32
    %9 = arith.cmpi eq, %arg2, %c0_i32_8 : i32
    %10 = arith.extui %9 : i1 to i32
    %c0_i32_9 = arith.constant 0 : i32
    %11 = arith.cmpi ne, %10, %c0_i32_9 : i32
    scf.if %11 {
      %c0_10 = arith.constant 0 : index
      %c0_11 = arith.constant 0 : index
      %12 = vector.load %arg9[%c0_10, %c0_11] : memref<256x64xf32, #tpu.memory_space<vmem>>, vector<256x64xf32>
      %c0_12 = arith.constant 0 : index
      %c0_13 = arith.constant 0 : index
      %13 = vector.load %arg5[%c0_12, %c0_13] : memref<1x64xf32, #tpu.memory_space<vmem>>, vector<1x64xf32>
      %14 = vector.broadcast %13 : vector<1x64xf32> to vector<256x64xf32>
      %15 = arith.mulf %12, %14 : vector<256x64xf32>
      %c0_14 = arith.constant 0 : index
      %c0_15 = arith.constant 0 : index
      %16 = vector.load %arg6[%c0_14, %c0_15] : memref<1x64xf32, #tpu.memory_space<vmem>>, vector<1x64xf32>
      %17 = vector.broadcast %16 : vector<1x64xf32> to vector<256x64xf32>
      %18 = arith.addf %15, %17 : vector<256x64xf32>
      %cst_16 = arith.constant 0.000000e+00 : f32
      %19 = vector.broadcast %cst_16 : f32 to vector<256x64xf32>
      %20 = arith.cmpf oge, %18, %19 : vector<256x64xf32>
      %c0_17 = arith.constant 0 : index
      %c0_18 = arith.constant 0 : index
      %21 = vector.load %arg7[%c0_17, %c0_18] : memref<1x64xf32, #tpu.memory_space<vmem>>, vector<1x64xf32>
      %22 = vector.broadcast %21 : vector<1x64xf32> to vector<256x64xf32>
      %23 = arith.mulf %22, %18 : vector<256x64xf32>
      %24 = arith.select %20, %18, %23 : vector<256x64xi1>, vector<256x64xf32>
      %25 = arith.truncf %24 : vector<256x64xf32> to vector<256x64xbf16>
      %c0_19 = arith.constant 0 : index
      %c0_20 = arith.constant 0 : index
      %26 = vector.load %arg8[%c0_19, %c0_20] : memref<256x64xbf16, #tpu.memory_space<vmem>>, vector<256x64xbf16>
      tpu.vector_store %arg8[%c0_19, %c0_20], %25 {strides = array<i32>} : memref<256x64xbf16, #tpu.memory_space<vmem>>, vector<256x64xbf16>,
    } else {
    }
    return
  }
  func.func @transform_0(%arg0: i32, %arg1: i32, %arg2: i32) -> (i32, i32) {
    %c0_i32 = arith.constant 0 : i32
    return %arg0, %arg2 : i32, i32
  }
  func.func @transform_1(%arg0: i32, %arg1: i32, %arg2: i32) -> (i32, i32) {
    %c0_i32 = arith.constant 0 : i32
    return %arg2, %arg1 : i32, i32
  }
  func.func @transform_2(%arg0: i32, %arg1: i32, %arg2: i32) -> (i32, i32) {
    %c0_i32 = arith.constant 0 : i32
    %c0_i32_0 = arith.constant 0 : i32
    return %c0_i32, %arg1 : i32, i32
  }
  func.func @transform_3(%arg0: i32, %arg1: i32, %arg2: i32) -> (i32, i32) {
    %c0_i32 = arith.constant 0 : i32
    %c0_i32_0 = arith.constant 0 : i32
    return %c0_i32, %arg1 : i32, i32
  }
  func.func @transform_4(%arg0: i32, %arg1: i32, %arg2: i32) -> (i32, i32) {
    %c0_i32 = arith.constant 0 : i32
    %c0_i32_0 = arith.constant 0 : i32
    return %c0_i32, %arg1 : i32, i32
  }
  func.func @transform_5(%arg0: i32, %arg1: i32, %arg2: i32) -> (i32, i32) {
    %c0_i32 = arith.constant 0 : i32
    return %arg0, %arg1 : i32, i32
  }
}

</mosaic_0001>

<llo_original>
// kernel: tpu_custom_call.1
$region0: #{tpu_custom_call.1}
  #allocation0 [shape = 'u32[]', space=smem, size = 0x4, offset = 0x4, fixed_abs, tag = 'smem constant byte address 0x4 - core index']
  #allocation1 [shape = 'u32[144,128]{1,0:T(1,128)}', space=vmem, size = 0x12000, scoped, tag = 'internal scratch']
  #allocation2 [shape = 'f32[256,64]{1,0:T(8,128)}', space=vmem, size = 0x20000, scoped, tag = 'scratch operand']
  %s0 = inlined_call_operand.vmem [shape: bf16[25088,27], index: 0, kind: input, shape index: {}]
  %s1 = inlined_call_operand.vmem [shape: bf16[27,64], index: 1, kind: input, shape index: {}]
  %s2 = inlined_call_operand.vmem [shape: f32[1,64], index: 2, kind: input, shape index: {}]
  %s3 = inlined_call_operand.vmem [shape: f32[1,64], index: 3, kind: input, shape index: {}]
  %s4 = inlined_call_operand.vmem [shape: f32[1,64], index: 4, kind: input, shape index: {}]
  %s5 = inlined_call_operand.vmem [shape: bf16[25088,64], index: 5, kind: output, shape index: {}]
  %s6 = sld [smem:[#allocation0]]
  $region61: #{tpu_custom_call.1} parent=0
    _
  %s8 = ssub.s32 1, %s6
  %s9 = scalar_select 0, %s8, %s6
  loop: start=0, step=1, limit=100
  $region2: #{tpu_custom_call.1} parent=0 // loop_pre_header
    _
  $region3: #{tpu_custom_call.1} parent=0 // loop_header
    %s11 = sphi 0, %s15
    %p12 = scmp.ge.s32.totalorder %s11, 100
    %s18 = sphi 0, %s37
    %s19 = sphi 0, %s33
    %s20 = sphi 0, %s29
    %s21 = sphi 0, %s18
    %s22 = sphi 0, %s19
    %s23 = sphi 0, %s20
    %s24 = sphi 0, %s21
    %s25 = sphi 0, %s22
    %s26 = sphi 0, %s23
    %s42 = sphi 0, %s44
    %s45 = sphi 0, %s42
    %s46 = sphi 0, %s45
    %s62 = sphi 0, %s46
    %s70 = sphi 0, %s72
    %s73 = sphi 0, %s70
    %s74 = sphi 0, %s73
    %s90 = sphi 0, %s74
    %s96 = sphi 0, %s98
    %s99 = sphi 0, %s96
    %s100 = sphi 0, %s99
    %s116 = sphi 0, %s100
    %s122 = sphi 0, %s124
    %s125 = sphi 0, %s122
    %s126 = sphi 0, %s125
    %s142 = sphi 0, %s126
    %s148 = sphi 0, %s150
    %s151 = sphi 0, %s148
    %s152 = sphi 0, %s151
    %s168 = sphi 0, %s152
    %s176 = sphi 0, %s178
    %s179 = sphi 0, %s176
    %s180 = sphi 0, %s179
    %s196 = sphi 0, %s180
  $region4: #{tpu_custom_call.1} parent=0 // loop_header_branch
    %14 = sbr.rel (%p12) target = $region8
  $region5: #{tpu_custom_call.1} parent=0 // loop_body
    %s16 = ssub.s32 %s11, 1
    %s17 = ssub.s32 %s11, 2
    %s27 = sadd.s32 1, %s20
    %p28 = scmp.ge.s32.totalorder %s27, 1
    %s29 = scalar_select %p28, 0, %s27
    %s30 = sadd.s32 1, %s19
    %s31 = scalar_select %p28, %s30, %s19
    %p32 = scmp.ge.s32.totalorder %s31, 1
    %s33 = scalar_select %p32, 0, %s31
    %s34 = sadd.s32 1, %s18
    %s35 = scalar_select %p32, %s34, %s18
    %p36 = scmp.ge.s32.totalorder %s35, 98
    %s37 = scalar_select %p36, 0, %s35
    %s38 = ssub.s32 %s18, %s37
    %s39 = ssub.s32 %s20, %s29
    %s40 = sor.u32 %s38, %s39
    %p41 = scmp.eq.s32.totalorder %s40, 0
    %s43 = sadd.s32 %s42, 1
    %s44 = scalar_select %p41, %s42, %s43
    %p47 = pneg %p41
    %p48 = scmp.eq.s32.totalorder %s11, 97
    %p49 = por %p47, %p48
    %p50 = scmp.ne.s32.totalorder %s42, %s45
    %p51 = scmp.eq.s32.totalorder %s11, 0
    %p52 = por %p50, %p51
    %p53 = scmp.ne.s32.totalorder %s42, %s45
    %p54 = scmp.eq.s32.totalorder %s16, 97
    %p55 = por %p53, %p54
    %p56 = scmp.ne.s32.totalorder %s45, %s46
    %p57 = scmp.eq.s32.totalorder %s16, 0
    %p58 = por %p56, %p57
    %p59 = scmp.ne.s32.totalorder %s45, %s46
    %p60 = scmp.eq.s32.totalorder %s17, 97
    %p61 = por %p59, %p60
    %p63 = scmp.ne.s32.totalorder %s46, %s62
    %p64 = scmp.eq.s32.totalorder %s17, 0
    %p65 = por %p63, %p64
    %s66 = ssub.s32 %s20, %s29
    %s67 = ssub.s32 %s19, %s33
    %s68 = sor.u32 %s66, %s67
    %p69 = scmp.eq.s32.totalorder %s68, 0
    %s71 = sadd.s32 %s70, 1
    %s72 = scalar_select %p69, %s70, %s71
    %p75 = pneg %p69
    %p76 = scmp.eq.s32.totalorder %s11, 97
    %p77 = por %p75, %p76
    %p78 = scmp.ne.s32.totalorder %s70, %s73
    %p79 = scmp.eq.s32.totalorder %s11, 0
    %p80 = por %p78, %p79
    %p81 = scmp.ne.s32.totalorder %s70, %s73
    %p82 = scmp.eq.s32.totalorder %s16, 97
    %p83 = por %p81, %p82
    %p84 = scmp.ne.s32.totalorder %s73, %s74
    %p85 = scmp.eq.s32.totalorder %s16, 0
    %p86 = por %p84, %p85
    %p87 = scmp.ne.s32.totalorder %s73, %s74
    %p88 = scmp.eq.s32.totalorder %s17, 97
    %p89 = por %p87, %p88
    %p91 = scmp.ne.s32.totalorder %s74, %s90
    %p92 = scmp.eq.s32.totalorder %s17, 0
    %p93 = por %p91, %p92
    %s94 = ssub.s32 %s19, %s33
    %p95 = scmp.eq.s32.totalorder %s94, 0
    %s97 = sadd.s32 %s96, 1
    %s98 = scalar_select %p95, %s96, %s97
    %p101 = pneg %p95
    %p102 = scmp.eq.s32.totalorder %s11, 97
    %p103 = por %p101, %p102
    %p104 = scmp.ne.s32.totalorder %s96, %s99
    %p105 = scmp.eq.s32.totalorder %s11, 0
    %p106 = por %p104, %p105
    %p107 = scmp.ne.s32.totalorder %s96, %s99
    %p108 = scmp.eq.s32.totalorder %s16, 97
    %p109 = por %p107, %p108
    %p110 = scmp.ne.s32.totalorder %s99, %s100
    %p111 = scmp.eq.s32.totalorder %s16, 0
    %p112 = por %p110, %p111
    %p113 = scmp.ne.s32.totalorder %s99, %s100
    %p114 = scmp.eq.s32.totalorder %s17, 97
    %p115 = por %p113, %p114
    %p117 = scmp.ne.s32.totalorder %s100, %s116
    %p118 = scmp.eq.s32.totalorder %s17, 0
    %p119 = por %p117, %p118
    %s120 = ssub.s32 %s19, %s33
    %p121 = scmp.eq.s32.totalorder %s120, 0
    %s123 = sadd.s32 %s122, 1
    %s124 = scalar_select %p121, %s122, %s123
    %p127 = pneg %p121
    %p128 = scmp.eq.s32.totalorder %s11, 97
    %p129 = por %p127, %p128
    %p130 = scmp.ne.s32.totalorder %s122, %s125
    %p131 = scmp.eq.s32.totalorder %s11, 0
    %p132 = por %p130, %p131
    %p133 = scmp.ne.s32.totalorder %s122, %s125
    %p134 = scmp.eq.s32.totalorder %s16, 97
    %p135 = por %p133, %p134
    %p136 = scmp.ne.s32.totalorder %s125, %s126
    %p137 = scmp.eq.s32.totalorder %s16, 0
    %p138 = por %p136, %p137
    %p139 = scmp.ne.s32.totalorder %s125, %s126
    %p140 = scmp.eq.s32.totalorder %s17, 97
    %p141 = por %p139, %p140
    %p143 = scmp.ne.s32.totalorder %s126, %s142
    %p144 = scmp.eq.s32.totalorder %s17, 0
    %p145 = por %p143, %p144
    %s146 = ssub.s32 %s19, %s33
    %p147 = scmp.eq.s32.totalorder %s146, 0
    %s149 = sadd.s32 %s148, 1
    %s150 = scalar_select %p147, %s148, %s149
    %p153 = pneg %p147
    %p154 = scmp.eq.s32.totalorder %s11, 97
    %p155 = por %p153, %p154
    %p156 = scmp.ne.s32.totalorder %s148, %s151
    %p157 = scmp.eq.s32.totalorder %s11, 0
    %p158 = por %p156, %p157
    %p159 = scmp.ne.s32.totalorder %s148, %s151
    %p160 = scmp.eq.s32.totalorder %s16, 97
    %p161 = por %p159, %p160
    %p162 = scmp.ne.s32.totalorder %s151, %s152
    %p163 = scmp.eq.s32.totalorder %s16, 0
    %p164 = por %p162, %p163
    %p165 = scmp.ne.s32.totalorder %s151, %s152
    %p166 = scmp.eq.s32.totalorder %s17, 97
    %p167 = por %p165, %p166
    %p169 = scmp.ne.s32.totalorder %s152, %s168
    %p170 = scmp.eq.s32.totalorder %s17, 0
    %p171 = por %p169, %p170
    %s172 = ssub.s32 %s18, %s37
    %s173 = ssub.s32 %s19, %s33
    %s174 = sor.u32 %s172, %s173
    %p175 = scmp.eq.s32.totalorder %s174, 0
    %s177 = sadd.s32 %s176, 1
    %s178 = scalar_select %p175, %s176, %s177
    %p181 = pneg %p175
    %p182 = scmp.eq.s32.totalorder %s11, 97
    %p183 = por %p181, %p182
    %p184 = scmp.ne.s32.totalorder %s176, %s179
    %p185 = scmp.eq.s32.totalorder %s11, 0
    %p186 = por %p184, %p185
    %p187 = scmp.ne.s32.totalorder %s176, %s179
    %p188 = scmp.eq.s32.totalorder %s16, 97
    %p189 = por %p187, %p188
    %p190 = scmp.ne.s32.totalorder %s179, %s180
    %p191 = scmp.eq.s32.totalorder %s16, 0
    %p192 = por %p190, %p191
    %p193 = scmp.ne.s32.totalorder %s179, %s180
    %p194 = scmp.eq.s32.totalorder %s17, 97
    %p195 = por %p193, %p194
    %p197 = scmp.ne.s32.totalorder %s180, %s196
    %p198 = scmp.eq.s32.totalorder %s17, 0
    %p199 = por %p197, %p198
    %p200 = scmp.le.s32.totalorder 1, %s11
    %p201 = scmp.lt.s32.totalorder %s11, 99
    %p202 = pnand %p200, %p201
    %p203 = pneg %p202
    // Predicated region
    $region9: #{tpu_custom_call.1} parent=5 // pred_check
      _
    $region10: #{tpu_custom_call.1} parent=5 // pred_check_branch
      %205 = sbr.rel (%p202) target = $region12
    $region11: #{tpu_custom_call.1} parent=5 // pred_region
      %s206 = ssub.s32 %s11, 1
      // Predicated region
      $region13: #{tpu_custom_call.1} parent=11 // pred_check
        %p207 = pneg %p86
      $region14: #{tpu_custom_call.1} parent=11 // pred_check_branch
        %209 = sbr.rel (%p207) target = $region16
      $region15: #{tpu_custom_call.1} parent=11 // pred_region
        %s210 = smul.u32 4, %s23
        %p211 = scmp.lt.s32.totalorder %s210, 3
        %s212 = scalar_select %p211, %s210, 3
        %p213 = scmp.lt.s32.totalorder %s22, 0
        %s214 = scalar_select %p213, %s22, 0
        %s215 = sadd.s32 %s214, %s212
        %s216 = smul.addr %s215, 4
        %s217 = scalar_lea.vmem %s1, %s216
        %s218 = smul.u32 4, %s23
      $region16: #{tpu_custom_call.1} parent=11 // pred_fallthru
        _
      // Predicated region
      $region17: #{tpu_custom_call.1} parent=11 // pred_check
        %p219 = pneg %p112
      $region18: #{tpu_custom_call.1} parent=11 // pred_check_branch
        %221 = sbr.rel (%p219) target = $region20
      $region19: #{tpu_custom_call.1} parent=11 // pred_region
        %p222 = scmp.lt.s32.totalorder %s22, 0
        %s223 = scalar_select %p222, %s22, 0
        %s224 = scalar_lea.vmem %s2, %s223
      $region20: #{tpu_custom_call.1} parent=11 // pred_fallthru
        _
      // Predicated region
      $region21: #{tpu_custom_call.1} parent=11 // pred_check
        %p225 = pneg %p138
      $region22: #{tpu_custom_call.1} parent=11 // pred_check_branch
        %227 = sbr.rel (%p225) target = $region24
      $region23: #{tpu_custom_call.1} parent=11 // pred_region
        %p228 = scmp.lt.s32.totalorder %s22, 0
        %s229 = scalar_select %p228, %s22, 0
        %s230 = scalar_lea.vmem %s3, %s229
      $region24: #{tpu_custom_call.1} parent=11 // pred_fallthru
        _
      // Predicated region
      $region25: #{tpu_custom_call.1} parent=11 // pred_check
        %p231 = pneg %p164
      $region26: #{tpu_custom_call.1} parent=11 // pred_check_branch
        %233 = sbr.rel (%p231) target = $region28
      $region27: #{tpu_custom_call.1} parent=11 // pred_region
        %p234 = scmp.lt.s32.totalorder %s22, 0
        %s235 = scalar_select %p234, %s22, 0
        %s236 = scalar_lea.vmem %s4, %s235
      $region28: #{tpu_custom_call.1} parent=11 // pred_fallthru
        _
    $region12: #{tpu_custom_call.1} parent=5 // pred_fallthru
      _
    %p237 = scmp.lt.s32.totalorder %s11, 98
    // Predicated region
    $region29: #{tpu_custom_call.1} parent=5 // pred_check
      %p238 = pneg %p237
    $region30: #{tpu_custom_call.1} parent=5 // pred_check_branch
      %240 = sbr.rel (%p238) target = $region32
    $region31: #{tpu_custom_call.1} parent=5 // pred_region
      // Predicated region
      $region33: #{tpu_custom_call.1} parent=31 // pred_check
        %p241 = pneg %p52
      $region34: #{tpu_custom_call.1} parent=31 // pred_check_branch
        %243 = sbr.rel (%p241) target = $region36
      $region35: #{tpu_custom_call.1} parent=31 // pred_region
        %s244 = smul.u32 32, %s18
        %p245 = scmp.lt.s32.totalorder %s244, 3135
        %s246 = scalar_select %p245, %s244, 3135
        %p247 = scmp.lt.s32.totalorder %s20, 0
        %s248 = scalar_select %p247, %s20, 0
        %s249 = sadd.s32 %s248, %s246
        %s250 = smul.addr %s249, 4
        %s251 = scalar_lea.vmem %s0, %s250
        %s252 = smul.u32 32, %s18
      $region36: #{tpu_custom_call.1} parent=31 // pred_fallthru
        _
    $region32: #{tpu_custom_call.1} parent=5 // pred_fallthru
      _
    %p253 = scmp.le.s32.totalorder 1, %s11
    %p254 = scmp.lt.s32.totalorder %s11, 99
    %p255 = pnand %p253, %p254
    %p256 = pneg %p255
    // Predicated region
    $region37: #{tpu_custom_call.1} parent=5 // pred_check
      _
    $region38: #{tpu_custom_call.1} parent=5 // pred_check_branch
      %258 = sbr.rel (%p255) target = $region40
    $region39: #{tpu_custom_call.1} parent=5 // pred_region
      %s259 = ssub.s32 %s11, 1
      %s260 = smul.u32 32, %s21
      %p261 = scmp.lt.s32.totalorder %s260, 3135
      %s262 = scalar_select %p261, %s260, 3135
      %p263 = scmp.lt.s32.totalorder %s23, 0
      %s264 = scalar_select %p263, %s23, 0
      %s265 = sadd.s32 %s264, %s262
      %s266 = smul.addr %s265, 4
      %s267 = scalar_lea.vmem %s0, %s266
      %p268 = pneg %p58
      %p269 = pneg %p55
      %s270 = smul.u32 4, %s23
      %p271 = scmp.lt.s32.totalorder %s270, 3
      %s272 = scalar_select %p271, %s270, 3
      %p273 = scmp.lt.s32.totalorder %s22, 0
      %s274 = scalar_select %p273, %s22, 0
      %s275 = sadd.s32 %s274, %s272
      %s276 = smul.addr %s275, 4
      %s277 = scalar_lea.vmem %s1, %s276
      %p278 = pneg %p86
      %p279 = pneg %p83
      %p280 = scmp.lt.s32.totalorder %s22, 0
      %s281 = scalar_select %p280, %s22, 0
      %s282 = scalar_lea.vmem %s2, %s281
      %p283 = pneg %p112
      %p284 = pneg %p109
      %p285 = scmp.lt.s32.totalorder %s22, 0
      %s286 = scalar_select %p285, %s22, 0
      %s287 = scalar_lea.vmem %s3, %s286
      %p288 = pneg %p138
      %p289 = pneg %p135
      %p290 = scmp.lt.s32.totalorder %s22, 0
      %s291 = scalar_select %p290, %s22, 0
      %s292 = scalar_lea.vmem %s4, %s291
      %p293 = pneg %p164
      %p294 = pneg %p161
      %p295 = pneg %p192
      %p296 = pneg %p189
      %s297 = smul.u32 32, %s21
      %p298 = scmp.lt.s32.totalorder %s297, 3135
      %s299 = scalar_select %p298, %s297, 3135
      %p300 = scmp.lt.s32.totalorder %s22, 0
      %s301 = scalar_select %p300, %s22, 0
      %s302 = sadd.s32 %s301, %s299
      %s303 = smul.addr %s302, 4
      %s304 = scalar_lea.vmem %s5, %s303
      %s305 = smul.u32 32, %s21
      %p306 = scmp.lt.s32.totalorder %s305, 3135
      %s307 = scalar_select %p306, %s305, 3135
      %p308 = scmp.lt.s32.totalorder %s23, 0
      %s309 = scalar_select %p308, %s23, 0
      %s310 = sadd.s32 %s309, %s307
      %s311 = smul.addr %s310, 4
      %s312 = scalar_lea.vmem %s0, %s311
      %s313 = smul.u32 32, %s21
      %s314 = smul.u32 4, %s23
      %p315 = scmp.lt.s32.totalorder %s314, 3
      %s316 = scalar_select %p315, %s314, 3
      %p317 = scmp.lt.s32.totalorder %s22, 0
      %s318 = scalar_select %p317, %s22, 0
      %s319 = sadd.s32 %s318, %s316
      %s320 = smul.addr %s319, 4
      %s321 = scalar_lea.vmem %s1, %s320
      %s322 = smul.u32 4, %s23
      %p323 = scmp.lt.s32.totalorder %s22, 0
      %s324 = scalar_select %p323, %s22, 0
      %s325 = scalar_lea.vmem %s2, %s324
      %p326 = scmp.lt.s32.totalorder %s22, 0
      %s327 = scalar_select %p326, %s22, 0
      %s328 = scalar_lea.vmem %s3, %s327
      %p329 = scmp.lt.s32.totalorder %s22, 0
      %s330 = scalar_select %p329, %s22, 0
      %s331 = scalar_lea.vmem %s4, %s330
      %s332 = smul.u32 32, %s21
      %p333 = scmp.lt.s32.totalorder %s332, 3135
      %s334 = scalar_select %p333, %s332, 3135
      %p335 = scmp.lt.s32.totalorder %s22, 0
      %s336 = scalar_select %p335, %s22, 0
      %s337 = sadd.s32 %s336, %s334
      %s338 = smul.addr %s337, 4
      %s339 = scalar_lea.vmem %s5, %s338
      %s340 = smul.u32 32, %s21
      %p342 = scmp.eq.s32.totalorder %s23, 0
      // Predicated region
      $region41: #{tpu_custom_call.1} parent=39 // pred_check
        %p343 = pneg %p342
      $region42: #{tpu_custom_call.1} parent=39 // pred_check_branch
        %345 = sbr.rel (%p343) target = $region44
      $region43: #{tpu_custom_call.1} parent=39 // pred_region
        %vm346 = vcmask 523264
        %347 = vst.msk [vmem:[#allocation2] sm:$0xff] %vm346, 0.0
        %348 = vst.msk [vmem:[#allocation2 + $0x8] sm:$0xff] %vm346, 0.0
        %349 = vst.msk [vmem:[#allocation2 + $0x10] sm:$0xff] %vm346, 0.0
        %350 = vst.msk [vmem:[#allocation2 + $0x18] sm:$0xff] %vm346, 0.0
        %351 = vst.msk [vmem:[#allocation2 + $0x20] sm:$0xff] %vm346, 0.0
        %352 = vst.msk [vmem:[#allocation2 + $0x28] sm:$0xff] %vm346, 0.0
        %353 = vst.msk [vmem:[#allocation2 + $0x30] sm:$0xff] %vm346, 0.0
        %354 = vst.msk [vmem:[#allocation2 + $0x38] sm:$0xff] %vm346, 0.0
        %355 = vst.msk [vmem:[#allocation2 + $0x40] sm:$0xff] %vm346, 0.0
        %356 = vst.msk [vmem:[#allocation2 + $0x48] sm:$0xff] %vm346, 0.0
        %357 = vst.msk [vmem:[#allocation2 + $0x50] sm:$0xff] %vm346, 0.0
        %358 = vst.msk [vmem:[#allocation2 + $0x58] sm:$0xff] %vm346, 0.0
        %359 = vst.msk [vmem:[#allocation2 + $0x60] sm:$0xff] %vm346, 0.0
        %360 = vst.msk [vmem:[#allocation2 + $0x68] sm:$0xff] %vm346, 0.0
        %361 = vst.msk [vmem:[#allocation2 + $0x70] sm:$0xff] %vm346, 0.0
        %362 = vst.msk [vmem:[#allocation2 + $0x78] sm:$0xff] %vm346, 0.0
        %363 = vst.msk [vmem:[#allocation2 + $0x80] sm:$0xff] %vm346, 0.0
        %364 = vst.msk [vmem:[#allocation2 + $0x88] sm:$0xff] %vm346, 0.0
        %365 = vst.msk [vmem:[#allocation2 + $0x90] sm:$0xff] %vm346, 0.0
        %366 = vst.msk [vmem:[#allocation2 + $0x98] sm:$0xff] %vm346, 0.0
        %367 = vst.msk [vmem:[#allocation2 + $0xa0] sm:$0xff] %vm346, 0.0
        %368 = vst.msk [vmem:[#allocation2 + $0xa8] sm:$0xff] %vm346, 0.0
        %369 = vst.msk [vmem:[#allocation2 + $0xb0] sm:$0xff] %vm346, 0.0
        %370 = vst.msk [vmem:[#allocation2 + $0xb8] sm:$0xff] %vm346, 0.0
        %371 = vst.msk [vmem:[#allocation2 + $0xc0] sm:$0xff] %vm346, 0.0
        %372 = vst.msk [vmem:[#allocation2 + $0xc8] sm:$0xff] %vm346, 0.0
        %373 = vst.msk [vmem:[#allocation2 + $0xd0] sm:$0xff] %vm346, 0.0
        %374 = vst.msk [vmem:[#allocation2 + $0xd8] sm:$0xff] %vm346, 0.0
        %375 = vst.msk [vmem:[#allocation2 + $0xe0] sm:$0xff] %vm346, 0.0
        %376 = vst.msk [vmem:[#allocation2 + $0xe8] sm:$0xff] %vm346, 0.0
        %377 = vst.msk [vmem:[#allocation2 + $0xf0] sm:$0xff] %vm346, 0.0
        %378 = vst.msk [vmem:[#allocation2 + $0xf8] sm:$0xff] %vm346, 0.0
      $region44: #{tpu_custom_call.1} parent=39 // pred_fallthru
        _
      %v379 = vld [vmem:[#allocation2] sm:$0xff]
      %v380 = vld [vmem:[#allocation2 + $0x8] sm:$0xff]
      %v381 = vld [vmem:[#allocation2 + $0x10] sm:$0xff]
      %v382 = vld [vmem:[#allocation2 + $0x18] sm:$0xff]
      %v383 = vld [vmem:[#allocation2 + $0x20] sm:$0xff]
      %v384 = vld [vmem:[#allocation2 + $0x28] sm:$0xff]
      %v385 = vld [vmem:[#allocation2 + $0x30] sm:$0xff]
      %v386 = vld [vmem:[#allocation2 + $0x38] sm:$0xff]
      %v387 = vld [vmem:[#allocation2 + $0x40] sm:$0xff]
      %v388 = vld [vmem:[#allocation2 + $0x48] sm:$0xff]
      %v389 = vld [vmem:[#allocation2 + $0x50] sm:$0xff]
      %v390 = vld [vmem:[#allocation2 + $0x58] sm:$0xff]
      %v391 = vld [vmem:[#allocation2 + $0x60] sm:$0xff]
      %v392 = vld [vmem:[#allocation2 + $0x68] sm:$0xff]
      %v393 = vld [vmem:[#allocation2 + $0x70] sm:$0xff]
      %v394 = vld [vmem:[#allocation2 + $0x78] sm:$0xff]
      %v395 = vld [vmem:[#allocation2 + $0x80] sm:$0xff]
      %v396 = vld [vmem:[#allocation2 + $0x88] sm:$0xff]
      %v397 = vld [vmem:[#allocation2 + $0x90] sm:$0xff]
      %v398 = vld [vmem:[#allocation2 + $0x98] sm:$0xff]
      %v399 = vld [vmem:[#allocation2 + $0xa0] sm:$0xff]
      %v400 = vld [vmem:[#allocation2 + $0xa8] sm:$0xff]
      %v401 = vld [vmem:[#allocation2 + $0xb0] sm:$0xff]
      %v402 = vld [vmem:[#allocation2 + $0xb8] sm:$0xff]
      %v403 = vld [vmem:[#allocation2 + $0xc0] sm:$0xff]
      %v404 = vld [vmem:[#allocation2 + $0xc8] sm:$0xff]
      %v405 = vld [vmem:[#allocation2 + $0xd0] sm:$0xff]
      %v406 = vld [vmem:[#allocation2 + $0xd8] sm:$0xff]
      %v407 = vld [vmem:[#allocation2 + $0xe0] sm:$0xff]
      %v408 = vld [vmem:[#allocation2 + $0xe8] sm:$0xff]
      %v409 = vld [vmem:[#allocation2 + $0xf0] sm:$0xff]
      %v410 = vld [vmem:[#allocation2 + $0xf8] sm:$0xff]
      %v411 = vld [vmem:[%s312] sm:$0xf]
      %v412 = vld [vmem:[%s312 + $0x4] sm:$0xf]
      %v413 = vld [vmem:[%s312 + $0x8] sm:$0xf]
      %v414 = vld [vmem:[%s312 + $0xc] sm:$0xf]
      %v415 = vld [vmem:[%s312 + $0x10] sm:$0xf]
      %v416 = vld [vmem:[%s312 + $0x14] sm:$0xf]
      %v417 = vld [vmem:[%s312 + $0x18] sm:$0xf]
      %v418 = vld [vmem:[%s312 + $0x1c] sm:$0xf]
      %v419 = vld [vmem:[%s312 + $0x20] sm:$0xf]
      %v420 = vld [vmem:[%s312 + $0x24] sm:$0xf]
      %v421 = vld [vmem:[%s312 + $0x28] sm:$0xf]
      %v422 = vld [vmem:[%s312 + $0x2c] sm:$0xf]
      %v423 = vld [vmem:[%s312 + $0x30] sm:$0xf]
      %v424 = vld [vmem:[%s312 + $0x34] sm:$0xf]
      %v425 = vld [vmem:[%s312 + $0x38] sm:$0xf]
      %v426 = vld [vmem:[%s312 + $0x3c] sm:$0xf]
      %v427 = vld [vmem:[%s312 + $0x40] sm:$0xf]
      %v428 = vld [vmem:[%s312 + $0x44] sm:$0xf]
      %v429 = vld [vmem:[%s312 + $0x48] sm:$0xf]
      %v430 = vld [vmem:[%s312 + $0x4c] sm:$0xf]
      %v431 = vld [vmem:[%s312 + $0x50] sm:$0xf]
      %v432 = vld [vmem:[%s312 + $0x54] sm:$0xf]
      %v433 = vld [vmem:[%s312 + $0x58] sm:$0xf]
      %v434 = vld [vmem:[%s312 + $0x5c] sm:$0xf]
      %v435 = vld [vmem:[%s312 + $0x60] sm:$0xf]
      %v436 = vld [vmem:[%s312 + $0x64] sm:$0xf]
      %v437 = vld [vmem:[%s312 + $0x68] sm:$0xf]
      %v438 = vld [vmem:[%s312 + $0x6c] sm:$0xf]
      %v439 = vld [vmem:[%s312 + $0x70] sm:$0xf]
      %v440 = vld [vmem:[%s312 + $0x74] sm:$0xf]
      %v441 = vld [vmem:[%s312 + $0x78] sm:$0xf]
      %v442 = vld [vmem:[%s312 + $0x7c] sm:$0xf]
      %v443 = vld [vmem:[%s321] sm:$0xf]
      %v444 = vld [vmem:[%s321 + $0x4] sm:$0xf]
      %v445 = vld [vmem:[%s321 + $0x8] sm:$0xf]
      %v446 = vld [vmem:[%s321 + $0xc] sm:$0x3]
      %v479 = vunpack.c.l.b16 %v411
      %v480 = vunpack.c.l.b16 %v412
      %v481 = vunpack.c.l.b16 %v413
      %v482 = vunpack.c.l.b16 %v414
      %v483 = vunpack.c.l.b16 %v415
      %v484 = vunpack.c.l.b16 %v416
      %v485 = vunpack.c.l.b16 %v417
      %v486 = vunpack.c.l.b16 %v418
      %v487 = vunpack.c.l.b16 %v419
      %v488 = vunpack.c.l.b16 %v420
      %v489 = vunpack.c.l.b16 %v421
      %v490 = vunpack.c.l.b16 %v422
      %v491 = vunpack.c.l.b16 %v423
      %v492 = vunpack.c.l.b16 %v424
      %v493 = vunpack.c.l.b16 %v425
      %v494 = vunpack.c.l.b16 %v426
      %v495 = vunpack.c.l.b16 %v427
      %v496 = vunpack.c.l.b16 %v428
      %v497 = vunpack.c.l.b16 %v429
      %v498 = vunpack.c.l.b16 %v430
      %v499 = vunpack.c.l.b16 %v431
      %v500 = vunpack.c.l.b16 %v432
      %v501 = vunpack.c.l.b16 %v433
      %v502 = vunpack.c.l.b16 %v434
      %v503 = vunpack.c.l.b16 %v435
      %v504 = vunpack.c.l.b16 %v436
      %v505 = vunpack.c.l.b16 %v437
      %v506 = vunpack.c.l.b16 %v438
      %v507 = vunpack.c.l.b16 %v439
      %v508 = vunpack.c.l.b16 %v440
      %v509 = vunpack.c.l.b16 %v441
      %v510 = vunpack.c.l.b16 %v442
      %v511 = vpack.c.b16 %v480, %v479
      %v512 = vpack.c.b16 %v482, %v481
      %v513 = vpack.c.b16 %v484, %v483
      %v514 = vpack.c.b16 %v486, %v485
      %v515 = vpack.c.b16 %v488, %v487
      %v516 = vpack.c.b16 %v490, %v489
      %v517 = vpack.c.b16 %v492, %v491
      %v518 = vpack.c.b16 %v494, %v493
      %v519 = vpack.c.b16 %v496, %v495
      %v520 = vpack.c.b16 %v498, %v497
      %v521 = vpack.c.b16 %v500, %v499
      %v522 = vpack.c.b16 %v502, %v501
      %v523 = vpack.c.b16 %v504, %v503
      %v524 = vpack.c.b16 %v506, %v505
      %v525 = vpack.c.b16 %v508, %v507
      %v526 = vpack.c.b16 %v510, %v509
      %v531 = vunpack.c.l.b16 %v443
      %v532 = vunpack.c.l.b16 %v444
      %v533 = vunpack.c.l.b16 %v445
      %v534 = vunpack.c.l.b16 %v446
      %v535 = vpack.c.b16 %v532, %v531
      %v536 = vpack.c.b16 %v534, %v533
      %vm538 = vcmask 220160
      %v540 = vsel %vm538, %v511, 0
      %v543 = vsel %vm538, %v512, 0
      %v546 = vsel %vm538, %v513, 0
      %v549 = vsel %vm538, %v514, 0
      %v552 = vsel %vm538, %v515, 0
      %v555 = vsel %vm538, %v516, 0
      %v558 = vsel %vm538, %v517, 0
      %v561 = vsel %vm538, %v518, 0
      %v564 = vsel %vm538, %v519, 0
      %v567 = vsel %vm538, %v520, 0
      %v570 = vsel %vm538, %v521, 0
      %v573 = vsel %vm538, %v522, 0
      %v576 = vsel %vm538, %v523, 0
      %v579 = vsel %vm538, %v524, 0
      %v582 = vsel %vm538, %v525, 0
      %v585 = vsel %vm538, %v526, 0
      %vm587 = vcmask 1044480
      %vm588 = vcmask 1045504
      %v589 = vsel %vm587, 4294967295, 65535
      %v590 = vsel %vm588, %v589, 0
      %v592 = vand.u32 %v536, %v590
      %594 = vmatprep.subr.bf16.mxu0 0
      %595 = vmatpush1.bf16.msra.mxu0 0
      %596 = vmatprep.subr.bf16.mxu0 0
      %597 = vmatpush1.bf16.msra.mxu0 0
      %598 = vmatprep.subr.bf16.mxu0 0
      %599 = vmatpush1.bf16.msra.mxu0 0
      %600 = vmatprep.subr.bf16.mxu0 0
      %601 = vmatpush1.bf16.msra.mxu0 0
      %602 = vmatprep.subr.bf16.mxu0 0
      %603 = vmatpush1.bf16.msra.mxu0 0
      %604 = vmatprep.subr.bf16.mxu0 0
      %605 = vmatpush1.bf16.msra.mxu0 0
      %606 = vmatprep.subr.bf16.mxu0 0
      %607 = vmatpush1.bf16.msra.mxu0 %v592
      %608 = vmatprep.subr.bf16.mxu0 0
      %609 = vmatpush1.bf16.msra.mxu0 %v535
      %610 = vmatprep.subr.bf16.mxu0 0
      %611 = vmatpush2.bf16.msra.mxu0 0
      %612 = vmatprep.subr.bf16.mxu0 0
      %613 = vmatpush2.bf16.msra.mxu0 0
      %614 = vmatprep.subr.bf16.mxu0 0
      %615 = vmatpush2.bf16.msra.mxu0 0
      %616 = vmatprep.subr.bf16.mxu0 0
      %617 = vmatpush2.bf16.msra.mxu0 0
      %618 = vmatprep.subr.bf16.mxu0 0
      %619 = vmatpush2.bf16.msra.mxu0 0
      %620 = vmatprep.subr.bf16.mxu0 0
      %621 = vmatpush2.bf16.msra.mxu0 0
      %622 = vmatprep.subr.bf16.mxu0 0
      %623 = vmatpush2.bf16.msra.mxu0 0
      %624 = vmatprep.subr.bf16.mxu0 0
      %625 = vmatpush2.bf16.msra.mxu0 0
      %626 = vmatprep.mubr.bf16.mxu0 0
      %627 = vmatmul.mubr.bf16.gmra.mxu0 %v540
      %v628 = vpop.f32.mrf.mxu0
      %v629 = vadd.f32 0.0, %v628
      %v630 = vpop.f32.mrf.mxu0
      %v631 = vpop.f32.mrf.mxu0
      %v632 = vadd.f32 0.0, %v631
      %v633 = vpop.f32.mrf.mxu0
      %634 = vmatprep.mubr.bf16.mxu0 0
      %635 = vmatmul.mubr.bf16.gmra.mxu0 %v543
      %v636 = vpop.f32.mrf.mxu0
      %v637 = vadd.f32 0.0, %v636
      %v638 = vpop.f32.mrf.mxu0
      %v639 = vpop.f32.mrf.mxu0
      %v640 = vadd.f32 0.0, %v639
      %v641 = vpop.f32.mrf.mxu0
      %642 = vmatprep.mubr.bf16.mxu0 0
      %643 = vmatmul.mubr.bf16.gmra.mxu0 %v546
      %v644 = vpop.f32.mrf.mxu0
      %v645 = vadd.f32 0.0, %v644
      %v646 = vpop.f32.mrf.mxu0
      %v647 = vpop.f32.mrf.mxu0
      %v648 = vadd.f32 0.0, %v647
      %v649 = vpop.f32.mrf.mxu0
      %650 = vmatprep.mubr.bf16.mxu0 0
      %651 = vmatmul.mubr.bf16.gmra.mxu0 %v549
      %v652 = vpop.f32.mrf.mxu0
      %v653 = vadd.f32 0.0, %v652
      %v654 = vpop.f32.mrf.mxu0
      %v655 = vpop.f32.mrf.mxu0
      %v656 = vadd.f32 0.0, %v655
      %v657 = vpop.f32.mrf.mxu0
      %658 = vmatprep.mubr.bf16.mxu0 0
      %659 = vmatmul.mubr.bf16.gmra.mxu0 %v552
      %v660 = vpop.f32.mrf.mxu0
      %v661 = vadd.f32 0.0, %v660
      %v662 = vpop.f32.mrf.mxu0
      %v663 = vpop.f32.mrf.mxu0
      %v664 = vadd.f32 0.0, %v663
      %v665 = vpop.f32.mrf.mxu0
      %666 = vmatprep.mubr.bf16.mxu0 0
      %667 = vmatmul.mubr.bf16.gmra.mxu0 %v555
      %v668 = vpop.f32.mrf.mxu0
      %v669 = vadd.f32 0.0, %v668
      %v670 = vpop.f32.mrf.mxu0
      %v671 = vpop.f32.mrf.mxu0
      %v672 = vadd.f32 0.0, %v671
      %v673 = vpop.f32.mrf.mxu0
      %674 = vmatprep.mubr.bf16.mxu0 0
      %675 = vmatmul.mubr.bf16.gmra.mxu0 %v558
      %v676 = vpop.f32.mrf.mxu0
      %v677 = vadd.f32 0.0, %v676
      %v678 = vpop.f32.mrf.mxu0
      %v679 = vpop.f32.mrf.mxu0
      %v680 = vadd.f32 0.0, %v679
      %v681 = vpop.f32.mrf.mxu0
      %682 = vmatprep.mubr.bf16.mxu0 0
      %683 = vmatmul.mubr.bf16.gmra.mxu0 %v561
      %v684 = vpop.f32.mrf.mxu0
      %v685 = vadd.f32 0.0, %v684
      %v686 = vpop.f32.mrf.mxu0
      %v687 = vpop.f32.mrf.mxu0
      %v688 = vadd.f32 0.0, %v687
      %v689 = vpop.f32.mrf.mxu0
      %690 = vmatprep.mubr.bf16.mxu0 0
      %691 = vmatmul.mubr.bf16.gmra.mxu0 %v564
      %v692 = vpop.f32.mrf.mxu0
      %v693 = vadd.f32 0.0, %v692
      %v694 = vpop.f32.mrf.mxu0
      %v695 = vpop.f32.mrf.mxu0
      %v696 = vadd.f32 0.0, %v695
      %v697 = vpop.f32.mrf.mxu0
      %698 = vmatprep.mubr.bf16.mxu0 0
      %699 = vmatmul.mubr.bf16.gmra.mxu0 %v567
      %v700 = vpop.f32.mrf.mxu0
      %v701 = vadd.f32 0.0, %v700
      %v702 = vpop.f32.mrf.mxu0
      %v703 = vpop.f32.mrf.mxu0
      %v704 = vadd.f32 0.0, %v703
      %v705 = vpop.f32.mrf.mxu0
      %706 = vmatprep.mubr.bf16.mxu0 0
      %707 = vmatmul.mubr.bf16.gmra.mxu0 %v570
      %v708 = vpop.f32.mrf.mxu0
      %v709 = vadd.f32 0.0, %v708
      %v710 = vpop.f32.mrf.mxu0
      %v711 = vpop.f32.mrf.mxu0
      %v712 = vadd.f32 0.0, %v711
      %v713 = vpop.f32.mrf.mxu0
      %714 = vmatprep.mubr.bf16.mxu0 0
      %715 = vmatmul.mubr.bf16.gmra.mxu0 %v573
      %v716 = vpop.f32.mrf.mxu0
      %v717 = vadd.f32 0.0, %v716
      %v718 = vpop.f32.mrf.mxu0
      %v719 = vpop.f32.mrf.mxu0
      %v720 = vadd.f32 0.0, %v719
      %v721 = vpop.f32.mrf.mxu0
      %722 = vmatprep.mubr.bf16.mxu0 0
      %723 = vmatmul.mubr.bf16.gmra.mxu0 %v576
      %v724 = vpop.f32.mrf.mxu0
      %v725 = vadd.f32 0.0, %v724
      %v726 = vpop.f32.mrf.mxu0
      %v727 = vpop.f32.mrf.mxu0
      %v728 = vadd.f32 0.0, %v727
      %v729 = vpop.f32.mrf.mxu0
      %730 = vmatprep.mubr.bf16.mxu0 0
      %731 = vmatmul.mubr.bf16.gmra.mxu0 %v579
      %v732 = vpop.f32.mrf.mxu0
      %v733 = vadd.f32 0.0, %v732
      %v734 = vpop.f32.mrf.mxu0
      %v735 = vpop.f32.mrf.mxu0
      %v736 = vadd.f32 0.0, %v735
      %v737 = vpop.f32.mrf.mxu0
      %738 = vmatprep.mubr.bf16.mxu0 0
      %739 = vmatmul.mubr.bf16.gmra.mxu0 %v582
      %v740 = vpop.f32.mrf.mxu0
      %v741 = vadd.f32 0.0, %v740
      %v742 = vpop.f32.mrf.mxu0
      %v743 = vpop.f32.mrf.mxu0
      %v744 = vadd.f32 0.0, %v743
      %v745 = vpop.f32.mrf.mxu0
      %746 = vmatprep.mubr.bf16.mxu0 0
      %747 = vmatmul.mubr.bf16.gmra.mxu0 %v585
      %v748 = vpop.f32.mrf.mxu0
      %v749 = vadd.f32 0.0, %v748
      %v750 = vpop.f32.mrf.mxu0
      %v751 = vpop.f32.mrf.mxu0
      %v752 = vadd.f32 0.0, %v751
      %v753 = vpop.f32.mrf.mxu0
      %754 = vdwg.mxu0
      %v755 = vadd.f32 %v379, %v629
      %v756 = vadd.f32 %v380, %v632
      %v757 = vadd.f32 %v381, %v637
      %v758 = vadd.f32 %v382, %v640
      %v759 = vadd.f32 %v383, %v645
      %v760 = vadd.f32 %v384, %v648
      %v761 = vadd.f32 %v385, %v653
      %v762 = vadd.f32 %v386, %v656
      %v763 = vadd.f32 %v387, %v661
      %v764 = vadd.f32 %v388, %v664
      %v765 = vadd.f32 %v389, %v669
      %v766 = vadd.f32 %v390, %v672
      %v767 = vadd.f32 %v391, %v677
      %v768 = vadd.f32 %v392, %v680
      %v769 = vadd.f32 %v393, %v685
      %v770 = vadd.f32 %v394, %v688
      %v771 = vadd.f32 %v395, %v693
      %v772 = vadd.f32 %v396, %v696
      %v773 = vadd.f32 %v397, %v701
      %v774 = vadd.f32 %v398, %v704
      %v775 = vadd.f32 %v399, %v709
      %v776 = vadd.f32 %v400, %v712
      %v777 = vadd.f32 %v401, %v717
      %v778 = vadd.f32 %v402, %v720
      %v779 = vadd.f32 %v403, %v725
      %v780 = vadd.f32 %v404, %v728
      %v781 = vadd.f32 %v405, %v733
      %v782 = vadd.f32 %v406, %v736
      %v783 = vadd.f32 %v407, %v741
      %v784 = vadd.f32 %v408, %v744
      %v785 = vadd.f32 %v409, %v749
      %v786 = vadd.f32 %v410, %v752
      %vm787 = vcmask 523264
      %788 = vst.msk [vmem:[#allocation2] sm:$0xff] %vm787, %v755
      %789 = vst.msk [vmem:[#allocation2 + $0x8] sm:$0xff] %vm787, %v756
      %790 = vst.msk [vmem:[#allocation2 + $0x10] sm:$0xff] %vm787, %v757
      %791 = vst.msk [vmem:[#allocation2 + $0x18] sm:$0xff] %vm787, %v758
      %792 = vst.msk [vmem:[#allocation2 + $0x20] sm:$0xff] %vm787, %v759
      %793 = vst.msk [vmem:[#allocation2 + $0x28] sm:$0xff] %vm787, %v760
      %794 = vst.msk [vmem:[#allocation2 + $0x30] sm:$0xff] %vm787, %v761
      %795 = vst.msk [vmem:[#allocation2 + $0x38] sm:$0xff] %vm787, %v762
      %796 = vst.msk [vmem:[#allocation2 + $0x40] sm:$0xff] %vm787, %v763
      %797 = vst.msk [vmem:[#allocation2 + $0x48] sm:$0xff] %vm787, %v764
      %798 = vst.msk [vmem:[#allocation2 + $0x50] sm:$0xff] %vm787, %v765
      %799 = vst.msk [vmem:[#allocation2 + $0x58] sm:$0xff] %vm787, %v766
      %800 = vst.msk [vmem:[#allocation2 + $0x60] sm:$0xff] %vm787, %v767
      %801 = vst.msk [vmem:[#allocation2 + $0x68] sm:$0xff] %vm787, %v768
      %802 = vst.msk [vmem:[#allocation2 + $0x70] sm:$0xff] %vm787, %v769
      %803 = vst.msk [vmem:[#allocation2 + $0x78] sm:$0xff] %vm787, %v770
      %804 = vst.msk [vmem:[#allocation2 + $0x80] sm:$0xff] %vm787, %v771
      %805 = vst.msk [vmem:[#allocation2 + $0x88] sm:$0xff] %vm787, %v772
      %806 = vst.msk [vmem:[#allocation2 + $0x90] sm:$0xff] %vm787, %v773
      %807 = vst.msk [vmem:[#allocation2 + $0x98] sm:$0xff] %vm787, %v774
      %808 = vst.msk [vmem:[#allocation2 + $0xa0] sm:$0xff] %vm787, %v775
      %809 = vst.msk [vmem:[#allocation2 + $0xa8] sm:$0xff] %vm787, %v776
      %810 = vst.msk [vmem:[#allocation2 + $0xb0] sm:$0xff] %vm787, %v777
      %811 = vst.msk [vmem:[#allocation2 + $0xb8] sm:$0xff] %vm787, %v778
      %812 = vst.msk [vmem:[#allocation2 + $0xc0] sm:$0xff] %vm787, %v779
      %813 = vst.msk [vmem:[#allocation2 + $0xc8] sm:$0xff] %vm787, %v780
      %814 = vst.msk [vmem:[#allocation2 + $0xd0] sm:$0xff] %vm787, %v781
      %815 = vst.msk [vmem:[#allocation2 + $0xd8] sm:$0xff] %vm787, %v782
      %816 = vst.msk [vmem:[#allocation2 + $0xe0] sm:$0xff] %vm787, %v783
      %817 = vst.msk [vmem:[#allocation2 + $0xe8] sm:$0xff] %vm787, %v784
      %818 = vst.msk [vmem:[#allocation2 + $0xf0] sm:$0xff] %vm787, %v785
      %819 = vst.msk [vmem:[#allocation2 + $0xf8] sm:$0xff] %vm787, %v786
      // Predicated region
      $region45: #{tpu_custom_call.1} parent=39 // pred_check
        %p820 = pneg %p342
      $region46: #{tpu_custom_call.1} parent=39 // pred_check_branch
        %822 = sbr.rel (%p820) target = $region48
      $region47: #{tpu_custom_call.1} parent=39 // pred_region
        %v823 = vld [vmem:[#allocation2] sm:$0xff]
        %v824 = vld [vmem:[#allocation2 + $0x8] sm:$0xff]
        %v825 = vld [vmem:[#allocation2 + $0x10] sm:$0xff]
        %v826 = vld [vmem:[#allocation2 + $0x18] sm:$0xff]
        %v827 = vld [vmem:[#allocation2 + $0x20] sm:$0xff]
        %v828 = vld [vmem:[#allocation2 + $0x28] sm:$0xff]
        %v829 = vld [vmem:[#allocation2 + $0x30] sm:$0xff]
        %v830 = vld [vmem:[#allocation2 + $0x38] sm:$0xff]
        %v831 = vld [vmem:[#allocation2 + $0x40] sm:$0xff]
        %v832 = vld [vmem:[#allocation2 + $0x48] sm:$0xff]
        %v833 = vld [vmem:[#allocation2 + $0x50] sm:$0xff]
        %v834 = vld [vmem:[#allocation2 + $0x58] sm:$0xff]
        %v835 = vld [vmem:[#allocation2 + $0x60] sm:$0xff]
        %v836 = vld [vmem:[#allocation2 + $0x68] sm:$0xff]
        %v837 = vld [vmem:[#allocation2 + $0x70] sm:$0xff]
        %v838 = vld [vmem:[#allocation2 + $0x78] sm:$0xff]
        %v839 = vld [vmem:[#allocation2 + $0x80] sm:$0xff]
        %v840 = vld [vmem:[#allocation2 + $0x88] sm:$0xff]
        %v841 = vld [vmem:[#allocation2 + $0x90] sm:$0xff]
        %v842 = vld [vmem:[#allocation2 + $0x98] sm:$0xff]
        %v843 = vld [vmem:[#allocation2 + $0xa0] sm:$0xff]
        %v844 = vld [vmem:[#allocation2 + $0xa8] sm:$0xff]
        %v845 = vld [vmem:[#allocation2 + $0xb0] sm:$0xff]
        %v846 = vld [vmem:[#allocation2 + $0xb8] sm:$0xff]
        %v847 = vld [vmem:[#allocation2 + $0xc0] sm:$0xff]
        %v848 = vld [vmem:[#allocation2 + $0xc8] sm:$0xff]
        %v849 = vld [vmem:[#allocation2 + $0xd0] sm:$0xff]
        %v850 = vld [vmem:[#allocation2 + $0xd8] sm:$0xff]
        %v851 = vld [vmem:[#allocation2 + $0xe0] sm:$0xff]
        %v852 = vld [vmem:[#allocation2 + $0xe8] sm:$0xff]
        %v853 = vld [vmem:[#allocation2 + $0xf0] sm:$0xff]
        %v854 = vld [vmem:[#allocation2 + $0xf8] sm:$0xff]
        %v855 = vld [vmem:[%s325] sm:$0x1]
        %v857 = vlaneseq
        %v858 = vshrl.u32 %v857, 7
        %v859 = vsub.s32 0, %v858
        %v860 = vrot.slane %v855, %v859
        %v862 = vmul.f32 %v823, %v860
        %v863 = vmul.f32 %v824, %v860
        %v864 = vmul.f32 %v825, %v860
        %v865 = vmul.f32 %v826, %v860
        %v866 = vmul.f32 %v827, %v860
        %v867 = vmul.f32 %v828, %v860
        %v868 = vmul.f32 %v829, %v860
        %v869 = vmul.f32 %v830, %v860
        %v870 = vmul.f32 %v831, %v860
        %v871 = vmul.f32 %v832, %v860
        %v872 = vmul.f32 %v833, %v860
        %v873 = vmul.f32 %v834, %v860
        %v874 = vmul.f32 %v835, %v860
        %v875 = vmul.f32 %v836, %v860
        %v876 = vmul.f32 %v837, %v860
        %v877 = vmul.f32 %v838, %v860
        %v878 = vmul.f32 %v839, %v860
        %v879 = vmul.f32 %v840, %v860
        %v880 = vmul.f32 %v841, %v860
        %v881 = vmul.f32 %v842, %v860
        %v882 = vmul.f32 %v843, %v860
        %v883 = vmul.f32 %v844, %v860
        %v884 = vmul.f32 %v845, %v860
        %v885 = vmul.f32 %v846, %v860
        %v886 = vmul.f32 %v847, %v860
        %v887 = vmul.f32 %v848, %v860
        %v888 = vmul.f32 %v849, %v860
        %v889 = vmul.f32 %v850, %v860
        %v890 = vmul.f32 %v851, %v860
        %v891 = vmul.f32 %v852, %v860
        %v892 = vmul.f32 %v853, %v860
        %v893 = vmul.f32 %v854, %v860
        %v894 = vld [vmem:[%s328] sm:$0x1]
        %v896 = vlaneseq
        %v897 = vshrl.u32 %v896, 7
        %v898 = vsub.s32 0, %v897
        %v899 = vrot.slane %v894, %v898
        %v901 = vadd.f32 %v862, %v899
        %v902 = vadd.f32 %v863, %v899
        %v903 = vadd.f32 %v864, %v899
        %v904 = vadd.f32 %v865, %v899
        %v905 = vadd.f32 %v866, %v899
        %v906 = vadd.f32 %v867, %v899
        %v907 = vadd.f32 %v868, %v899
        %v908 = vadd.f32 %v869, %v899
        %v909 = vadd.f32 %v870, %v899
        %v910 = vadd.f32 %v871, %v899
        %v911 = vadd.f32 %v872, %v899
        %v912 = vadd.f32 %v873, %v899
        %v913 = vadd.f32 %v874, %v899
        %v914 = vadd.f32 %v875, %v899
        %v915 = vadd.f32 %v876, %v899
        %v916 = vadd.f32 %v877, %v899
        %v917 = vadd.f32 %v878, %v899
        %v918 = vadd.f32 %v879, %v899
        %v919 = vadd.f32 %v880, %v899
        %v920 = vadd.f32 %v881, %v899
        %v921 = vadd.f32 %v882, %v899
        %v922 = vadd.f32 %v883, %v899
        %v923 = vadd.f32 %v884, %v899
        %v924 = vadd.f32 %v885, %v899
        %v925 = vadd.f32 %v886, %v899
        %v926 = vadd.f32 %v887, %v899
        %v927 = vadd.f32 %v888, %v899
        %v928 = vadd.f32 %v889, %v899
        %v929 = vadd.f32 %v890, %v899
        %v930 = vadd.f32 %v891, %v899
        %v931 = vadd.f32 %v892, %v899
        %v932 = vadd.f32 %v893, %v899
        %vm933 = vcmp.ge.f32.partialorder %v901, 0.0
        %vm934 = vcmp.ge.f32.partialorder %v902, 0.0
        %vm935 = vcmp.ge.f32.partialorder %v903, 0.0
        %vm936 = vcmp.ge.f32.partialorder %v904, 0.0
        %vm937 = vcmp.ge.f32.partialorder %v905, 0.0
        %vm938 = vcmp.ge.f32.partialorder %v906, 0.0
        %vm939 = vcmp.ge.f32.partialorder %v907, 0.0
        %vm940 = vcmp.ge.f32.partialorder %v908, 0.0
        %vm941 = vcmp.ge.f32.partialorder %v909, 0.0
        %vm942 = vcmp.ge.f32.partialorder %v910, 0.0
        %vm943 = vcmp.ge.f32.partialorder %v911, 0.0
        %vm944 = vcmp.ge.f32.partialorder %v912, 0.0
        %vm945 = vcmp.ge.f32.partialorder %v913, 0.0
        %vm946 = vcmp.ge.f32.partialorder %v914, 0.0
        %vm947 = vcmp.ge.f32.partialorder %v915, 0.0
        %vm948 = vcmp.ge.f32.partialorder %v916, 0.0
        %vm949 = vcmp.ge.f32.partialorder %v917, 0.0
        %vm950 = vcmp.ge.f32.partialorder %v918, 0.0
        %vm951 = vcmp.ge.f32.partialorder %v919, 0.0
        %vm952 = vcmp.ge.f32.partialorder %v920, 0.0
        %vm953 = vcmp.ge.f32.partialorder %v921, 0.0
        %vm954 = vcmp.ge.f32.partialorder %v922, 0.0
        %vm955 = vcmp.ge.f32.partialorder %v923, 0.0
        %vm956 = vcmp.ge.f32.partialorder %v924, 0.0
        %vm957 = vcmp.ge.f32.partialorder %v925, 0.0
        %vm958 = vcmp.ge.f32.partialorder %v926, 0.0
        %vm959 = vcmp.ge.f32.partialorder %v927, 0.0
        %vm960 = vcmp.ge.f32.partialorder %v928, 0.0
        %vm961 = vcmp.ge.f32.partialorder %v929, 0.0
        %vm962 = vcmp.ge.f32.partialorder %v930, 0.0
        %vm963 = vcmp.ge.f32.partialorder %v931, 0.0
        %vm964 = vcmp.ge.f32.partialorder %v932, 0.0
        %v965 = vld [vmem:[%s331] sm:$0x1]
        %v967 = vlaneseq
        %v968 = vshrl.u32 %v967, 7
        %v969 = vsub.s32 0, %v968
        %v970 = vrot.slane %v965, %v969
        %v972 = vmul.f32 %v970, %v901
        %v973 = vmul.f32 %v970, %v902
        %v974 = vmul.f32 %v970, %v903
        %v975 = vmul.f32 %v970, %v904
        %v976 = vmul.f32 %v970, %v905
        %v977 = vmul.f32 %v970, %v906
        %v978 = vmul.f32 %v970, %v907
        %v979 = vmul.f32 %v970, %v908
        %v980 = vmul.f32 %v970, %v909
        %v981 = vmul.f32 %v970, %v910
        %v982 = vmul.f32 %v970, %v911
        %v983 = vmul.f32 %v970, %v912
        %v984 = vmul.f32 %v970, %v913
        %v985 = vmul.f32 %v970, %v914
        %v986 = vmul.f32 %v970, %v915
        %v987 = vmul.f32 %v970, %v916
        %v988 = vmul.f32 %v970, %v917
        %v989 = vmul.f32 %v970, %v918
        %v990 = vmul.f32 %v970, %v919
        %v991 = vmul.f32 %v970, %v920
        %v992 = vmul.f32 %v970, %v921
        %v993 = vmul.f32 %v970, %v922
        %v994 = vmul.f32 %v970, %v923
        %v995 = vmul.f32 %v970, %v924
        %v996 = vmul.f32 %v970, %v925
        %v997 = vmul.f32 %v970, %v926
        %v998 = vmul.f32 %v970, %v927
        %v999 = vmul.f32 %v970, %v928
        %v1000 = vmul.f32 %v970, %v929
        %v1001 = vmul.f32 %v970, %v930
        %v1002 = vmul.f32 %v970, %v931
        %v1003 = vmul.f32 %v970, %v932
        %v1004 = vsel %vm933, %v901, %v972
        %v1005 = vsel %vm934, %v902, %v973
        %v1006 = vsel %vm935, %v903, %v974
        %v1007 = vsel %vm936, %v904, %v975
        %v1008 = vsel %vm937, %v905, %v976
        %v1009 = vsel %vm938, %v906, %v977
        %v1010 = vsel %vm939, %v907, %v978
        %v1011 = vsel %vm940, %v908, %v979
        %v1012 = vsel %vm941, %v909, %v980
        %v1013 = vsel %vm942, %v910, %v981
        %v1014 = vsel %vm943, %v911, %v982
        %v1015 = vsel %vm944, %v912, %v983
        %v1016 = vsel %vm945, %v913, %v984
        %v1017 = vsel %vm946, %v914, %v985
        %v1018 = vsel %vm947, %v915, %v986
        %v1019 = vsel %vm948, %v916, %v987
        %v1020 = vsel %vm949, %v917, %v988
        %v1021 = vsel %vm950, %v918, %v989
        %v1022 = vsel %vm951, %v919, %v990
        %v1023 = vsel %vm952, %v920, %v991
        %v1024 = vsel %vm953, %v921, %v992
        %v1025 = vsel %vm954, %v922, %v993
        %v1026 = vsel %vm955, %v923, %v994
        %v1027 = vsel %vm956, %v924, %v995
        %v1028 = vsel %vm957, %v925, %v996
        %v1029 = vsel %vm958, %v926, %v997
        %v1030 = vsel %vm959, %v927, %v998
        %v1031 = vsel %vm960, %v928, %v999
        %v1032 = vsel %vm961, %v929, %v1000
        %v1033 = vsel %vm962, %v930, %v1001
        %v1034 = vsel %vm963, %v931, %v1002
        %v1035 = vsel %vm964, %v932, %v1003
        %v1036 = vpack.c.bf16 %v1005, %v1004
        %v1037 = vpack.c.bf16 %v1007, %v1006
        %v1038 = vpack.c.bf16 %v1009, %v1008
        %v1039 = vpack.c.bf16 %v1011, %v1010
        %v1040 = vpack.c.bf16 %v1013, %v1012
        %v1041 = vpack.c.bf16 %v1015, %v1014
        %v1042 = vpack.c.bf16 %v1017, %v1016
        %v1043 = vpack.c.bf16 %v1019, %v1018
        %v1044 = vpack.c.bf16 %v1021, %v1020
        %v1045 = vpack.c.bf16 %v1023, %v1022
        %v1046 = vpack.c.bf16 %v1025, %v1024
        %v1047 = vpack.c.bf16 %v1027, %v1026
        %v1048 = vpack.c.bf16 %v1029, %v1028
        %v1049 = vpack.c.bf16 %v1031, %v1030
        %v1050 = vpack.c.bf16 %v1033, %v1032
        %v1051 = vpack.c.bf16 %v1035, %v1034
        %v1068 = vunpack.c.l.b16 %v1036
        %v1069 = vunpack.c.h.b16 %v1036
        %v1070 = vunpack.c.l.b16 %v1037
        %v1071 = vunpack.c.h.b16 %v1037
        %v1072 = vunpack.c.l.b16 %v1038
        %v1073 = vunpack.c.h.b16 %v1038
        %v1074 = vunpack.c.l.b16 %v1039
        %v1075 = vunpack.c.h.b16 %v1039
        %v1076 = vunpack.c.l.b16 %v1040
        %v1077 = vunpack.c.h.b16 %v1040
        %v1078 = vunpack.c.l.b16 %v1041
        %v1079 = vunpack.c.h.b16 %v1041
        %v1080 = vunpack.c.l.b16 %v1042
        %v1081 = vunpack.c.h.b16 %v1042
        %v1082 = vunpack.c.l.b16 %v1043
        %v1083 = vunpack.c.h.b16 %v1043
        %v1084 = vunpack.c.l.b16 %v1044
        %v1085 = vunpack.c.h.b16 %v1044
        %v1086 = vunpack.c.l.b16 %v1045
        %v1087 = vunpack.c.h.b16 %v1045
        %v1088 = vunpack.c.l.b16 %v1046
        %v1089 = vunpack.c.h.b16 %v1046
        %v1090 = vunpack.c.l.b16 %v1047
        %v1091 = vunpack.c.h.b16 %v1047
        %v1092 = vunpack.c.l.b16 %v1048
        %v1093 = vunpack.c.h.b16 %v1048
        %v1094 = vunpack.c.l.b16 %v1049
        %v1095 = vunpack.c.h.b16 %v1049
        %v1096 = vunpack.c.l.b16 %v1050
        %v1097 = vunpack.c.h.b16 %v1050
        %v1098 = vunpack.c.l.b16 %v1051
        %v1099 = vunpack.c.h.b16 %v1051
        %v1100 = vpack.c.b16 %v1068, %v1068
        %v1101 = vpack.c.b16 %v1069, %v1069
        %v1102 = vpack.c.b16 %v1070, %v1070
        %v1103 = vpack.c.b16 %v1071, %v1071
        %v1104 = vpack.c.b16 %v1072, %v1072
        %v1105 = vpack.c.b16 %v1073, %v1073
        %v1106 = vpack.c.b16 %v1074, %v1074
        %v1107 = vpack.c.b16 %v1075, %v1075
        %v1108 = vpack.c.b16 %v1076, %v1076
        %v1109 = vpack.c.b16 %v1077, %v1077
        %v1110 = vpack.c.b16 %v1078, %v1078
        %v1111 = vpack.c.b16 %v1079, %v1079
        %v1112 = vpack.c.b16 %v1080, %v1080
        %v1113 = vpack.c.b16 %v1081, %v1081
        %v1114 = vpack.c.b16 %v1082, %v1082
        %v1115 = vpack.c.b16 %v1083, %v1083
        %v1116 = vpack.c.b16 %v1084, %v1084
        %v1117 = vpack.c.b16 %v1085, %v1085
        %v1118 = vpack.c.b16 %v1086, %v1086
        %v1119 = vpack.c.b16 %v1087, %v1087
        %v1120 = vpack.c.b16 %v1088, %v1088
        %v1121 = vpack.c.b16 %v1089, %v1089
        %v1122 = vpack.c.b16 %v1090, %v1090
        %v1123 = vpack.c.b16 %v1091, %v1091
        %v1124 = vpack.c.b16 %v1092, %v1092
        %v1125 = vpack.c.b16 %v1093, %v1093
        %v1126 = vpack.c.b16 %v1094, %v1094
        %v1127 = vpack.c.b16 %v1095, %v1095
        %v1128 = vpack.c.b16 %v1096, %v1096
        %v1129 = vpack.c.b16 %v1097, %v1097
        %v1130 = vpack.c.b16 %v1098, %v1098
        %v1131 = vpack.c.b16 %v1099, %v1099
        %vm1164 = vcmask 519168
        %1165 = vst.msk [vmem:[%s339] sm:$0xf] %vm1164, %v1100
        %1166 = vst.msk [vmem:[%s339 + $0x4] sm:$0xf] %vm1164, %v1101
        %1167 = vst.msk [vmem:[%s339 + $0x8] sm:$0xf] %vm1164, %v1102
        %1168 = vst.msk [vmem:[%s339 + $0xc] sm:$0xf] %vm1164, %v1103
        %1169 = vst.msk [vmem:[%s339 + $0x10] sm:$0xf] %vm1164, %v1104
        %1170 = vst.msk [vmem:[%s339 + $0x14] sm:$0xf] %vm1164, %v1105
        %1171 = vst.msk [vmem:[%s339 + $0x18] sm:$0xf] %vm1164, %v1106
        %1172 = vst.msk [vmem:[%s339 + $0x1c] sm:$0xf] %vm1164, %v1107
        %1173 = vst.msk [vmem:[%s339 + $0x20] sm:$0xf] %vm1164, %v1108
        %1174 = vst.msk [vmem:[%s339 + $0x24] sm:$0xf] %vm1164, %v1109
        %1175 = vst.msk [vmem:[%s339 + $0x28] sm:$0xf] %vm1164, %v1110
        %1176 = vst.msk [vmem:[%s339 + $0x2c] sm:$0xf] %vm1164, %v1111
        %1177 = vst.msk [vmem:[%s339 + $0x30] sm:$0xf] %vm1164, %v1112
        %1178 = vst.msk [vmem:[%s339 + $0x34] sm:$0xf] %vm1164, %v1113
        %1179 = vst.msk [vmem:[%s339 + $0x38] sm:$0xf] %vm1164, %v1114
        %1180 = vst.msk [vmem:[%s339 + $0x3c] sm:$0xf] %vm1164, %v1115
        %1181 = vst.msk [vmem:[%s339 + $0x40] sm:$0xf] %vm1164, %v1116
        %1182 = vst.msk [vmem:[%s339 + $0x44] sm:$0xf] %vm1164, %v1117
        %1183 = vst.msk [vmem:[%s339 + $0x48] sm:$0xf] %vm1164, %v1118
        %1184 = vst.msk [vmem:[%s339 + $0x4c] sm:$0xf] %vm1164, %v1119
        %1185 = vst.msk [vmem:[%s339 + $0x50] sm:$0xf] %vm1164, %v1120
        %1186 = vst.msk [vmem:[%s339 + $0x54] sm:$0xf] %vm1164, %v1121
        %1187 = vst.msk [vmem:[%s339 + $0x58] sm:$0xf] %vm1164, %v1122
        %1188 = vst.msk [vmem:[%s339 + $0x5c] sm:$0xf] %vm1164, %v1123
        %1189 = vst.msk [vmem:[%s339 + $0x60] sm:$0xf] %vm1164, %v1124
        %1190 = vst.msk [vmem:[%s339 + $0x64] sm:$0xf] %vm1164, %v1125
        %1191 = vst.msk [vmem:[%s339 + $0x68] sm:$0xf] %vm1164, %v1126
        %1192 = vst.msk [vmem:[%s339 + $0x6c] sm:$0xf] %vm1164, %v1127
        %1193 = vst.msk [vmem:[%s339 + $0x70] sm:$0xf] %vm1164, %v1128
        %1194 = vst.msk [vmem:[%s339 + $0x74] sm:$0xf] %vm1164, %v1129
        %1195 = vst.msk [vmem:[%s339 + $0x78] sm:$0xf] %vm1164, %v1130
        %1196 = vst.msk [vmem:[%s339 + $0x7c] sm:$0xf] %vm1164, %v1131
      $region48: #{tpu_custom_call.1} parent=39 // pred_fallthru
        _
      %s1197 = smul.u32 32, %s21
      %p1198 = scmp.lt.s32.totalorder %s1197, 3135
      %s1199 = scalar_select %p1198, %s1197, 3135
      %p1200 = scmp.lt.s32.totalorder %s22, 0
      %s1201 = scalar_select %p1200, %s22, 0
      %s1202 = sadd.s32 %s1201, %s1199
      %s1203 = smul.addr %s1202, 4
      %s1204 = scalar_lea.vmem %s5, %s1203
      // Predicated region
      $region49: #{tpu_custom_call.1} parent=39 // pred_check
        %p1205 = pneg %p189
      $region50: #{tpu_custom_call.1} parent=39 // pred_check_branch
        %1207 = sbr.rel (%p1205) target = $region52
      $region51: #{tpu_custom_call.1} parent=39 // pred_region
        %s1208 = smul.u32 32, %s21
      $region52: #{tpu_custom_call.1} parent=39 // pred_fallthru
        _
    $region40: #{tpu_custom_call.1} parent=5 // pred_fallthru
      _
    %p1209 = scmp.le.s32.totalorder 2, %s11
    // Predicated region
    $region53: #{tpu_custom_call.1} parent=5 // pred_check
      %p1210 = pneg %p1209
    $region54: #{tpu_custom_call.1} parent=5 // pred_check_branch
      %1212 = sbr.rel (%p1210) target = $region56
    $region55: #{tpu_custom_call.1} parent=5 // pred_region
      %s1213 = ssub.s32 %s11, 2
      // Predicated region
      $region57: #{tpu_custom_call.1} parent=55 // pred_check
        %p1214 = pneg %p195
      $region58: #{tpu_custom_call.1} parent=55 // pred_check_branch
        %1216 = sbr.rel (%p1214) target = $region60
      $region59: #{tpu_custom_call.1} parent=55 // pred_region
        %s1217 = smul.u32 32, %s24
        %p1218 = scmp.lt.s32.totalorder %s1217, 3135
        %s1219 = scalar_select %p1218, %s1217, 3135
        %p1220 = scmp.lt.s32.totalorder %s25, 0
        %s1221 = scalar_select %p1220, %s25, 0
        %s1222 = sadd.s32 %s1221, %s1219
        %s1223 = smul.addr %s1222, 4
        %s1224 = scalar_lea.vmem %s5, %s1223
      $region60: #{tpu_custom_call.1} parent=55 // pred_fallthru
        _
    $region56: #{tpu_custom_call.1} parent=5 // pred_fallthru
      _
  $region6: #{tpu_custom_call.1} parent=0 // loop_footer
    %s15 = sadd.s32 1, %s11
  $region7: #{tpu_custom_call.1} parent=0 // loop_footer_branch
    %10 = sbr.rel target = $region3
  $region8: #{tpu_custom_call.1} parent=0 // loop_exit
    _

</llo_original>
